<compile_context>
chip_gen: v7x
topology: tpu7x:2x2x1
jax: 0.10.0
libtpu: 0.0.40
codegen_flags: <defaults>
</compile_context>

<pallas_src>
import functools

import numpy as np
import jax
import jax.numpy as jnp
from jax.experimental import pallas as pl
from jax.experimental.pallas import tpu as pltpu

_VMEM_SPEC = pl.BlockSpec(memory_space=pltpu.MemorySpace.VMEM)


# ------------------------------ fused kernel -------------------------------

def _fused_kernel(x_ref, w1_ref, b1_ref, se_ref,
                  w2_ref, b2_ref, w3_ref, b3_ref,
                  wh1_ref, bh1_ref, wh2_ref, bh2_ref,
                  out_ref,
                  lhs1_ref, lhs2_ref, lhs3_ref, lhsh_ref,
                  *, n_prim, samp_stride, n_head_rows, batch, c1):
    f32, bf16 = jnp.float32, jnp.bfloat16

    def mm(a, b):  # bf16 x bf16 -> f32 accumulation on the MXU
        return jnp.dot(a, b, preferred_element_type=f32)

    def up1(a):    # row r -> a[r+1] (cyclic; wrapped row only feeds junk rows)
        return pltpu.roll(a, a.shape[0] - 1, axis=0)

    # ---- Conv2d(3,16,2x2) + ReLU: one banded matmul, K doubled --------------
    x = x_ref[...]                                       # (B*H, W*C) f32
    k1 = x.shape[1]
    lhs1_ref[:, 0:k1] = x.astype(bf16)
    lhs1_ref[:, k1:2 * k1] = up1(x).astype(bf16)
    y1 = jnp.maximum(mm(lhs1_ref[...], w1_ref[...]) + b1_ref[...], 0.0)

    # ---- MaxPool2d(2x2) ------------------------------------------------------
    # rows: max(y1[2p], y1[2p+1]) then one block-diagonal selection matmul;
    # lanes: max over adjacent 16-lane channel blocks via two static slices
    #        (even-block selection is folded into w2 at init).
    hmax = jnp.maximum(y1, up1(y1))                      # (B*H, W1*16) f32
    rowsel = mm(se_ref[...], hmax.astype(bf16))          # (B*S, W1*16) f32
    lane_w = lhs2_ref.shape[1] // 2
    lanemax = jnp.maximum(rowsel[:, 0:lane_w],
                          rowsel[:, c1:c1 + lane_w])     # (B*S, (W1-1)*16)

    # ---- Conv2d(16,32,2x2) + ReLU (pool lane-selection folded into w2) ------
    lhs2_ref[:, 0:lane_w] = lanemax.astype(bf16)
    lhs2_ref[:, lane_w:2 * lane_w] = up1(lanemax).astype(bf16)
    y2 = jnp.maximum(mm(lhs2_ref[...], w2_ref[...]) + b2_ref[...], 0.0)

    # ---- Conv2d(32,64,2x2) + ReLU --------------------------------------------
    k3 = y2.shape[1]
    lhs3_ref[:, 0:k3] = y2.astype(bf16)
    lhs3_ref[:, k3:2 * k3] = up1(y2).astype(bf16)
    y3 = jnp.maximum(mm(lhs3_ref[...], w3_ref[...]) + b3_ref[...], 0.0)

    # ---- actor/critic heads: one K = H3*320 matmul over row-rolled copies ----
    kh = y3.shape[1]
    for i in range(n_head_rows):
        v = y3 if i == 0 else pltpu.roll(y3, y3.shape[0] - i, axis=0)
        lhsh_ref[:, i * kh:(i + 1) * kh] = v.astype(bf16)
    h_full = mm(lhsh_ref[...], wh1_ref[...]) + bh1_ref[...]   # (B*S, 128) f32

    # valid sample rows live at b*samp_stride
    h_sel = jnp.concatenate(
        [h_full[b * samp_stride:b * samp_stride + 1] for b in range(batch)],
        axis=0)                                               # (B, 128)
    o2 = mm(jnp.tanh(h_sel).astype(bf16), wh2_ref[...]) + bh2_ref[...]

    # cols [0, n_prim) = log_softmax(actor logits); col n_prim = critic value.
    col = jax.lax.broadcasted_iota(jnp.int32, o2.shape, 1)
    is_logit = col < n_prim
    masked = jnp.where(is_logit, o2, -1e30)                   # f32 softmax
    m = jnp.max(masked, axis=-1, keepdims=True)
    lse = jnp.log(jnp.sum(jnp.exp(masked - m), axis=-1, keepdims=True))
    out_ref[...] = jnp.where(is_logit, masked - m - lse, o2)


# ------------------------------ JAX-side glue -------------------------------

def forward(params, obs_image, memory, *, n_prim):
    B, H, W, C = obs_image.shape
    c1, c2, c3 = 16, 32, 64
    H1, W1 = H - 1, W - 1
    Hp, Wp = H1 // 2, W1 // 2
    H3, W3 = Hp - 2, Wp - 2
    S = ((Hp + 7) // 8) * 8          # per-sample row stride after pooling
    x2d = obs_image.reshape(B * H, W * C)      # free relayout: lanes = W*C

    out = pl.pallas_call(
        functools.partial(_fused_kernel, n_prim=n_prim, samp_stride=S,
                          n_head_rows=H3, batch=B, c1=c1),
        in_specs=[_VMEM_SPEC] * 12,
        out_specs=_VMEM_SPEC,
        out_shape=jax.ShapeDtypeStruct((B, 128), jnp.float32),
        scratch_shapes=[
            pltpu.VMEM((B * H, 2 * W * C), jnp.bfloat16),          # conv1 LHS
            pltpu.VMEM((B * S, 2 * (W1 - 1) * c1), jnp.bfloat16),  # conv2 LHS
            pltpu.VMEM((B * S, 2 * (Wp - 1) * c2), jnp.bfloat16),  # conv3 LHS
            pltpu.VMEM((B * S, H3 * W3 * c3), jnp.bfloat16),       # head LHS
        ],
    )(x2d,
      params["w1"], params["b1r"], params["se"],
      params["w2"], params["b2r"], params["w3"], params["b3r"],
      params["wh1"], params["bh1"], params["wh2"], params["bh2"])

    logp = out[:, :n_prim]            # F.log_softmax(actor(emb), dim=1)
    value = out[:, n_prim]            # critic(emb).squeeze(1)

    # Utterance heads: log-probs are param-only -> precomputed, broadcast.
    utter_logp = [jnp.broadcast_to(lp[None, :], (B, lp.shape[0]))
                  for lp in params["utter_logp"]]
    return [logp] + utter_logp, value, memory      # use_memory=False: passthru


def init_params(key, obs_image_shape, nvec, batch):
    """Synthetic params (torch layouts) converted to fused-kernel layouts."""
    H, W, Cin = obs_image_shape
    n_prim = int(nvec[0]) + 1
    assert n_prim + 1 <= 128, "actor logits + value must fit one 128-lane slab"
    c1, c2, c3 = 16, 32, 64
    H1, W1 = H - 1, W - 1
    Hp, Wp = H1 // 2, W1 // 2
    H2, W2 = Hp - 1, Wp - 1
    H3, W3 = H2 - 1, W2 - 1
    emb = H3 * W3 * c3
    S = ((Hp + 7) // 8) * 8

    ks = jax.random.split(key, 14)
    rnd = lambda k, s, sc: np.asarray(jax.random.normal(k, s, jnp.float32)) * sc

    # torch-layout synthetic weights
    w1, b1 = rnd(ks[0], (c1, Cin, 2, 2), 0.1), rnd(ks[1], (c1,), 0.1)
    w2, b2 = rnd(ks[2], (c2, c1, 2, 2), 0.1), rnd(ks[3], (c2,), 0.1)
    w3, b3 = rnd(ks[4], (c3, c2, 2, 2), 0.1), rnd(ks[5], (c3,), 0.1)
    wa1, ba1 = rnd(ks[6], (64, emb), 0.05), rnd(ks[7], (64,), 0.05)
    wa2, ba2 = rnd(ks[8], (n_prim, 64), 0.05), rnd(ks[9], (n_prim,), 0.05)
    wc1, bc1 = rnd(ks[10], (64, emb), 0.05), rnd(ks[11], (64,), 0.05)
    wc2, bc2 = rnd(ks[12], (1, 64), 0.05), rnd(ks[13], (1,), 0.05)
    utter = [np.ones((int(n),), np.float32) for n in nvec[1:]]   # torch.ones(n)

    # Conv2d (O,Cin,2,2) -> banded matmul weights (W-direction folded in).
    def conv_banded(w, w_in):
        o, cin = w.shape[0], w.shape[1]
        w_out = w_in - 1
        mats = []
        for dy in range(2):
            M = np.zeros((w_in * cin, w_out * o), np.float32)
            for dx in range(2):
                blk = w[:, :, dy, dx].T                     # (cin, o)
                for j in range(w_out):
                    M[(j + dx) * cin:(j + dx + 1) * cin,
                      j * o:(j + 1) * o] = blk
            mats.append(M)
        return mats

    w1a, w1b = conv_banded(w1, W)      # (W*Cin,  W1*c1)
    w2a, w2b = conv_banded(w2, Wp)     # (Wp*c1,  W2*c2)
    w3a, w3b = conv_banded(w3, W2)     # (W2*c2,  W3*c3)

    # merged (K-doubled) conv weights; pool lane-selection folded into conv2.
    lane_w = (W1 - 1) * c1
    te = np.zeros((lane_w, Wp * c1), np.float32)
    for q in range(Wp):
        te[2 * q * c1:(2 * q + 1) * c1, q * c1:(q + 1) * c1] = np.eye(c1)
    W1m = np.vstack([w1a, w1b])                 # (2*W*Cin,   W1*c1)
    W2m = np.vstack([te @ w2a, te @ w2b])       # (2*lane_w,  W2*c2)
    W3m = np.vstack([w3a, w3b])                 # (2*W2*c2,   W3*c3)
    b1r = np.tile(b1, W1)[None, :]
    b2r = np.tile(b2, W2)[None, :]
    b3r = np.tile(b3, W3)[None, :]

    # MaxPool row selection, block-diagonal over the batch (junk rows dropped).
    se = np.zeros((batch * S, batch * H), np.float32)
    for b in range(batch):
        for p in range(Hp):
            se[b * S + p, b * H + 2 * p] = 1.0

    # Heads: NCHW flatten folded into a row permutation; actor|critic packed.
    wa1r = np.transpose(wa1.reshape(64, c3, H3, W3), (2, 3, 1, 0))  # (i,j,c,o)
    wc1r = np.transpose(wc1.reshape(64, c3, H3, W3), (2, 3, 1, 0))
    wh1 = np.concatenate([wa1r.reshape(H3, W3 * c3, 64),
                          wc1r.reshape(H3, W3 * c3, 64)], axis=2)
    WH1 = wh1.reshape(H3 * W3 * c3, 128)
    bh1 = np.concatenate([ba1, bc1])[None, :]
    WH2 = np.zeros((128, 128), np.float32)
    WH2[0:64, 0:n_prim] = wa2.T
    WH2[64:128, n_prim] = wc2[0]
    bh2 = np.zeros((1, 128), np.float32)
    bh2[0, 0:n_prim] = ba2
    bh2[0, n_prim] = bc2[0]

    # Utterance log-probs are param-only constants -> precompute once.
    utter_logp = [jax.nn.log_softmax(jnp.asarray(p)) for p in utter]

    bf = jnp.bfloat16   # MXU operands bf16 (selection matrices exact in bf16)
    params = dict(
        w1=jnp.asarray(W1m, bf), b1r=jnp.asarray(b1r),
        se=jnp.asarray(se, bf),
        w2=jnp.asarray(W2m, bf), b2r=jnp.asarray(b2r),
        w3=jnp.asarray(W3m, bf), b3r=jnp.asarray(b3r),
        wh1=jnp.asarray(WH1, bf), bh1=jnp.asarray(bh1),
        wh2=jnp.asarray(WH2, bf), bh2=jnp.asarray(bh2),
        utter_logp=utter_logp)
    return params, emb


# TODO(synk): sample_action / construct_final_action (Categorical sampling and
# NaN masking) and the unused LSTM/GRU text/dialogue branches are host-side
# logic with no clean Pallas hot path; only the default forward is implemented.

if __name__ == "__main__":
    key = jax.random.PRNGKey(0)
    kimg, kparam = jax.random.split(key)

    B, H, W = 2, 16, 16                     # obs_space['image'] = (16, 16, 3)
    nvec = (6, 4, 5)                        # action_space.nvec -> 7 primitives
    n_prim = nvec[0] + 1
    obs_image = jax.random.uniform(kimg, (B, H, W, 3), jnp.float32)

    params, emb_size = init_params(kparam, (H, W, 3), nvec, batch=B)
    memory = jnp.zeros((B, 2 * emb_size), jnp.float32)  # 2 * semi_memory_size

    fwd = jax.jit(functools.partial(forward, n_prim=n_prim))
    dist, value, memory_out = fwd(params, obs_image, memory)
    jax.block_until_ready((dist, value, memory_out))

    assert dist[0].shape == (B, n_prim)
    assert dist[1].shape == (B, nvec[1]) and dist[2].shape == (B, nvec[2])
    assert value.shape == (B,)
    assert memory_out.shape == (B, 2 * emb_size)
    assert bool(jnp.all(jnp.isfinite(dist[0])))
    assert bool(jnp.all(jnp.isfinite(value)))
    # log-softmax rows must normalize to ~1 in probability space (f32 softmax)
    assert bool(jnp.all(jnp.abs(jnp.sum(jnp.exp(dist[0]), axis=1) - 1.0) < 1e-3))
    print("KERNEL_OK")
</pallas_src>

<mosaic_0001>
module attributes {stable_mosaic.version = 11 : i64} {
  func.func @_fused_kernel(%arg0: memref<32x48xf32, #tpu.memory_space<vmem>>, %arg1: memref<96x240xbf16, #tpu.memory_space<vmem>>, %arg2: memref<1x240xf32, #tpu.memory_space<vmem>>, %arg3: memref<16x32xbf16, #tpu.memory_space<vmem>>, %arg4: memref<448x192xbf16, #tpu.memory_space<vmem>>, %arg5: memref<1x192xf32, #tpu.memory_space<vmem>>, %arg6: memref<384x320xbf16, #tpu.memory_space<vmem>>, %arg7: memref<1x320xf32, #tpu.memory_space<vmem>>, %arg8: memref<1600x128xbf16, #tpu.memory_space<vmem>>, %arg9: memref<1x128xf32, #tpu.memory_space<vmem>>, %arg10: memref<128x128xbf16, #tpu.memory_space<vmem>>, %arg11: memref<1x128xf32, #tpu.memory_space<vmem>>, %arg12: memref<2x128xf32, #tpu.memory_space<vmem>>, %arg13: memref<32x96xbf16, #tpu.memory_space<vmem>>, %arg14: memref<16x448xbf16, #tpu.memory_space<vmem>>, %arg15: memref<16x384xbf16, #tpu.memory_space<vmem>>, %arg16: memref<16x1600xbf16, #tpu.memory_space<vmem>>) attributes {dimension_semantics = [], scalar_prefetch = 0 : i64, scratch_operands = 4 : i64, tpu.core_type = #tpu.core_type<tc>} {
    %c0 = arith.constant 0 : index
    %c0_0 = arith.constant 0 : index
    %0 = vector.load %arg0[%c0, %c0_0] : memref<32x48xf32, #tpu.memory_space<vmem>>, vector<32x48xf32>
    %1 = arith.truncf %0 : vector<32x48xf32> to vector<32x48xbf16>
    %c0_1 = arith.constant 0 : index
    %c0_2 = arith.constant 0 : index
    %2 = vector.load %arg13[%c0_1, %c0_2] : memref<32x96xbf16, #tpu.memory_space<vmem>>, vector<32x48xbf16>
    tpu.vector_store %arg13[%c0_1, %c0_2], %1 {strides = array<i32>} : memref<32x96xbf16, #tpu.memory_space<vmem>>, vector<32x48xbf16>,
    %c31_i32 = arith.constant 31 : i32
    %3 = tpu.dynamic_rotate %0 by %c31_i32 dim 0 : vector<32x48xf32>, i32 -> vector<32x48xf32>
    %4 = arith.truncf %3 : vector<32x48xf32> to vector<32x48xbf16>
    %c0_3 = arith.constant 0 : index
    %c48 = arith.constant 48 : index
    %5 = vector.load %arg13[%c0_3, %c48] : memref<32x96xbf16, #tpu.memory_space<vmem>>, vector<32x48xbf16>
    tpu.vector_store %arg13[%c0_3, %c48], %4 {strides = array<i32>} : memref<32x96xbf16, #tpu.memory_space<vmem>>, vector<32x48xbf16>,
    %c0_4 = arith.constant 0 : index
    %c0_5 = arith.constant 0 : index
    %6 = vector.load %arg13[%c0_4, %c0_5] : memref<32x96xbf16, #tpu.memory_space<vmem>>, vector<32x96xbf16>
    %c0_6 = arith.constant 0 : index
    %c0_7 = arith.constant 0 : index
    %7 = vector.load %arg1[%c0_6, %c0_7] : memref<96x240xbf16, #tpu.memory_space<vmem>>, vector<96x240xbf16>
    %cst = arith.constant dense<0.000000e+00> : vector<32x240xf32>
    %8 = tpu.matmul %6, %7, %cst {dimension_numbers = #tpu.dot_dimension_numbers<[1], [0], [0], [1], [0, 0, 1, 1], [], []>} : vector<32x96xbf16>, vector<96x240xbf16>, vector<32x240xf32> -> vector<32x240xf32>
    %c0_8 = arith.constant 0 : index
    %c0_9 = arith.constant 0 : index
    %9 = vector.load %arg2[%c0_8, %c0_9] : memref<1x240xf32, #tpu.memory_space<vmem>>, vector<1x240xf32>
    %10 = vector.broadcast %9 : vector<1x240xf32> to vector<32x240xf32>
    %11 = arith.addf %8, %10 : vector<32x240xf32>
    %cst_10 = arith.constant 0.000000e+00 : f32
    %12 = vector.broadcast %cst_10 : f32 to vector<32x240xf32>
    %13 = arith.maximumf %11, %12 : vector<32x240xf32>
    %c31_i32_11 = arith.constant 31 : i32
    %14 = tpu.dynamic_rotate %13 by %c31_i32_11 dim 0 : vector<32x240xf32>, i32 -> vector<32x240xf32>
    %15 = arith.maximumf %13, %14 : vector<32x240xf32>
    %c0_12 = arith.constant 0 : index
    %c0_13 = arith.constant 0 : index
    %16 = vector.load %arg3[%c0_12, %c0_13] : memref<16x32xbf16, #tpu.memory_space<vmem>>, vector<16x32xbf16>
    %17 = arith.truncf %15 : vector<32x240xf32> to vector<32x240xbf16>
    %cst_14 = arith.constant dense<0.000000e+00> : vector<16x240xf32>
    %18 = tpu.matmul %16, %17, %cst_14 {dimension_numbers = #tpu.dot_dimension_numbers<[1], [0], [0], [1], [0, 0, 1, 1], [], []>} : vector<16x32xbf16>, vector<32x240xbf16>, vector<16x240xf32> -> vector<16x240xf32>
    %19 = vector.extract_strided_slice %18 {offsets = [0, 0], sizes = [16, 224], strides = [1, 1]} : vector<16x240xf32> to vector<16x224xf32>
    %20 = vector.extract_strided_slice %18 {offsets = [0, 16], sizes = [16, 224], strides = [1, 1]} : vector<16x240xf32> to vector<16x224xf32>
    %21 = arith.maximumf %19, %20 : vector<16x224xf32>
    %22 = arith.truncf %21 : vector<16x224xf32> to vector<16x224xbf16>
    %c0_15 = arith.constant 0 : index
    %c0_16 = arith.constant 0 : index
    %23 = vector.load %arg14[%c0_15, %c0_16] : memref<16x448xbf16, #tpu.memory_space<vmem>>, vector<16x224xbf16>
    tpu.vector_store %arg14[%c0_15, %c0_16], %22 {strides = array<i32>} : memref<16x448xbf16, #tpu.memory_space<vmem>>, vector<16x224xbf16>,
    %c15_i32 = arith.constant 15 : i32
    %24 = tpu.dynamic_rotate %21 by %c15_i32 dim 0 : vector<16x224xf32>, i32 -> vector<16x224xf32>
    %25 = arith.truncf %24 : vector<16x224xf32> to vector<16x224xbf16>
    %c0_17 = arith.constant 0 : index
    %c224 = arith.constant 224 : index
    %26 = vector.load %arg14[%c0_17, %c224] : memref<16x448xbf16, #tpu.memory_space<vmem>>, vector<16x224xbf16>
    tpu.vector_store %arg14[%c0_17, %c224], %25 {strides = array<i32>} : memref<16x448xbf16, #tpu.memory_space<vmem>>, vector<16x224xbf16>,
    %c0_18 = arith.constant 0 : index
    %c0_19 = arith.constant 0 : index
    %27 = vector.load %arg14[%c0_18, %c0_19] : memref<16x448xbf16, #tpu.memory_space<vmem>>, vector<16x448xbf16>
    %c0_20 = arith.constant 0 : index
    %c0_21 = arith.constant 0 : index
    %28 = vector.load %arg4[%c0_20, %c0_21] : memref<448x192xbf16, #tpu.memory_space<vmem>>, vector<448x192xbf16>
    %cst_22 = arith.constant dense<0.000000e+00> : vector<16x192xf32>
    %29 = tpu.matmul %27, %28, %cst_22 {dimension_numbers = #tpu.dot_dimension_numbers<[1], [0], [0], [1], [0, 0, 1, 1], [], []>} : vector<16x448xbf16>, vector<448x192xbf16>, vector<16x192xf32> -> vector<16x192xf32>
    %c0_23 = arith.constant 0 : index
    %c0_24 = arith.constant 0 : index
    %30 = vector.load %arg5[%c0_23, %c0_24] : memref<1x192xf32, #tpu.memory_space<vmem>>, vector<1x192xf32>
    %31 = vector.broadcast %30 : vector<1x192xf32> to vector<16x192xf32>
    %32 = arith.addf %29, %31 : vector<16x192xf32>
    %cst_25 = arith.constant 0.000000e+00 : f32
    %33 = vector.broadcast %cst_25 : f32 to vector<16x192xf32>
    %34 = arith.maximumf %32, %33 : vector<16x192xf32>
    %35 = arith.truncf %34 : vector<16x192xf32> to vector<16x192xbf16>
    %c0_26 = arith.constant 0 : index
    %c0_27 = arith.constant 0 : index
    %36 = vector.load %arg15[%c0_26, %c0_27] : memref<16x384xbf16, #tpu.memory_space<vmem>>, vector<16x192xbf16>
    tpu.vector_store %arg15[%c0_26, %c0_27], %35 {strides = array<i32>} : memref<16x384xbf16, #tpu.memory_space<vmem>>, vector<16x192xbf16>,
    %c15_i32_28 = arith.constant 15 : i32
    %37 = tpu.dynamic_rotate %34 by %c15_i32_28 dim 0 : vector<16x192xf32>, i32 -> vector<16x192xf32>
    %38 = arith.truncf %37 : vector<16x192xf32> to vector<16x192xbf16>
    %c0_29 = arith.constant 0 : index
    %c192 = arith.constant 192 : index
    %39 = vector.load %arg15[%c0_29, %c192] : memref<16x384xbf16, #tpu.memory_space<vmem>>, vector<16x192xbf16>
    tpu.vector_store %arg15[%c0_29, %c192], %38 {strides = array<i32>} : memref<16x384xbf16, #tpu.memory_space<vmem>>, vector<16x192xbf16>,
    %c0_30 = arith.constant 0 : index
    %c0_31 = arith.constant 0 : index
    %40 = vector.load %arg15[%c0_30, %c0_31] : memref<16x384xbf16, #tpu.memory_space<vmem>>, vector<16x384xbf16>
    %c0_32 = arith.constant 0 : index
    %c0_33 = arith.constant 0 : index
    %41 = vector.load %arg6[%c0_32, %c0_33] : memref<384x320xbf16, #tpu.memory_space<vmem>>, vector<384x320xbf16>
    %cst_34 = arith.constant dense<0.000000e+00> : vector<16x320xf32>
    %42 = tpu.matmul %40, %41, %cst_34 {dimension_numbers = #tpu.dot_dimension_numbers<[1], [0], [0], [1], [0, 0, 1, 1], [], []>} : vector<16x384xbf16>, vector<384x320xbf16>, vector<16x320xf32> -> vector<16x320xf32>
    %c0_35 = arith.constant 0 : index
    %c0_36 = arith.constant 0 : index
    %43 = vector.load %arg7[%c0_35, %c0_36] : memref<1x320xf32, #tpu.memory_space<vmem>>, vector<1x320xf32>
    %44 = vector.broadcast %43 : vector<1x320xf32> to vector<16x320xf32>
    %45 = arith.addf %42, %44 : vector<16x320xf32>
    %cst_37 = arith.constant 0.000000e+00 : f32
    %46 = vector.broadcast %cst_37 : f32 to vector<16x320xf32>
    %47 = arith.maximumf %45, %46 : vector<16x320xf32>
    %48 = arith.truncf %47 : vector<16x320xf32> to vector<16x320xbf16>
    %c0_38 = arith.constant 0 : index
    %c0_39 = arith.constant 0 : index
    %49 = vector.load %arg16[%c0_38, %c0_39] : memref<16x1600xbf16, #tpu.memory_space<vmem>>, vector<16x320xbf16>
    tpu.vector_store %arg16[%c0_38, %c0_39], %48 {strides = array<i32>} : memref<16x1600xbf16, #tpu.memory_space<vmem>>, vector<16x320xbf16>,
    %c15_i32_40 = arith.constant 15 : i32
    %50 = tpu.dynamic_rotate %47 by %c15_i32_40 dim 0 : vector<16x320xf32>, i32 -> vector<16x320xf32>
    %51 = arith.truncf %50 : vector<16x320xf32> to vector<16x320xbf16>
    %c0_41 = arith.constant 0 : index
    %c320 = arith.constant 320 : index
    %52 = vector.load %arg16[%c0_41, %c320] : memref<16x1600xbf16, #tpu.memory_space<vmem>>, vector<16x320xbf16>
    tpu.vector_store %arg16[%c0_41, %c320], %51 {strides = array<i32>} : memref<16x1600xbf16, #tpu.memory_space<vmem>>, vector<16x320xbf16>,
    %c14_i32 = arith.constant 14 : i32
    %53 = tpu.dynamic_rotate %47 by %c14_i32 dim 0 : vector<16x320xf32>, i32 -> vector<16x320xf32>
    %54 = arith.truncf %53 : vector<16x320xf32> to vector<16x320xbf16>
    %c0_42 = arith.constant 0 : index
    %c640 = arith.constant 640 : index
    %55 = vector.load %arg16[%c0_42, %c640] : memref<16x1600xbf16, #tpu.memory_space<vmem>>, vector<16x320xbf16>
    tpu.vector_store %arg16[%c0_42, %c640], %54 {strides = array<i32>} : memref<16x1600xbf16, #tpu.memory_space<vmem>>, vector<16x320xbf16>,
    %c13_i32 = arith.constant 13 : i32
    %56 = tpu.dynamic_rotate %47 by %c13_i32 dim 0 : vector<16x320xf32>, i32 -> vector<16x320xf32>
    %57 = arith.truncf %56 : vector<16x320xf32> to vector<16x320xbf16>
    %c0_43 = arith.constant 0 : index
    %c960 = arith.constant 960 : index
    %58 = vector.load %arg16[%c0_43, %c960] : memref<16x1600xbf16, #tpu.memory_space<vmem>>, vector<16x320xbf16>
    tpu.vector_store %arg16[%c0_43, %c960], %57 {strides = array<i32>} : memref<16x1600xbf16, #tpu.memory_space<vmem>>, vector<16x320xbf16>,
    %c12_i32 = arith.constant 12 : i32
    %59 = tpu.dynamic_rotate %47 by %c12_i32 dim 0 : vector<16x320xf32>, i32 -> vector<16x320xf32>
    %60 = arith.truncf %59 : vector<16x320xf32> to vector<16x320xbf16>
    %c0_44 = arith.constant 0 : index
    %c1280 = arith.constant 1280 : index
    %61 = vector.load %arg16[%c0_44, %c1280] : memref<16x1600xbf16, #tpu.memory_space<vmem>>, vector<16x320xbf16>
    tpu.vector_store %arg16[%c0_44, %c1280], %60 {strides = array<i32>} : memref<16x1600xbf16, #tpu.memory_space<vmem>>, vector<16x320xbf16>,
    %c0_45 = arith.constant 0 : index
    %c0_46 = arith.constant 0 : index
    %62 = vector.load %arg16[%c0_45, %c0_46] : memref<16x1600xbf16, #tpu.memory_space<vmem>>, vector<16x1600xbf16>
    %c0_47 = arith.constant 0 : index
    %c0_48 = arith.constant 0 : index
    %63 = vector.load %arg8[%c0_47, %c0_48] : memref<1600x128xbf16, #tpu.memory_space<vmem>>, vector<1600x128xbf16>
    %cst_49 = arith.constant dense<0.000000e+00> : vector<16x128xf32>
    %64 = tpu.matmul %62, %63, %cst_49 {dimension_numbers = #tpu.dot_dimension_numbers<[1], [0], [0], [1], [0, 0, 1, 1], [], []>} : vector<16x1600xbf16>, vector<1600x128xbf16>, vector<16x128xf32> -> vector<16x128xf32>
    %c0_50 = arith.constant 0 : index
    %c0_51 = arith.constant 0 : index
    %65 = vector.load %arg9[%c0_50, %c0_51] : memref<1x128xf32, #tpu.memory_space<vmem>>, vector<1x128xf32>
    %66 = vector.broadcast %65 : vector<1x128xf32> to vector<16x128xf32>
    %67 = arith.addf %64, %66 : vector<16x128xf32>
    %68 = vector.extract_strided_slice %67 {offsets = [0, 0], sizes = [1, 128], strides = [1, 1]} : vector<16x128xf32> to vector<1x128xf32>
    %69 = vector.extract_strided_slice %67 {offsets = [8, 0], sizes = [1, 128], strides = [1, 1]} : vector<16x128xf32> to vector<1x128xf32>
    %70 = tpu.concatenate %68, %69 in 0 : vector<1x128xf32>, vector<1x128xf32> -> vector<2x128xf32>
    %71 = math.tanh %70 : vector<2x128xf32>
    %72 = arith.truncf %71 : vector<2x128xf32> to vector<2x128xbf16>
    %c0_52 = arith.constant 0 : index
    %c0_53 = arith.constant 0 : index
    %73 = vector.load %arg10[%c0_52, %c0_53] : memref<128x128xbf16, #tpu.memory_space<vmem>>, vector<128x128xbf16>
    %cst_54 = arith.constant dense<0.000000e+00> : vector<2x128xf32>
    %74 = tpu.matmul %72, %73, %cst_54 {dimension_numbers = #tpu.dot_dimension_numbers<[1], [0], [0], [1], [0, 0, 1, 1], [], []>} : vector<2x128xbf16>, vector<128x128xbf16>, vector<2x128xf32> -> vector<2x128xf32>
    %c0_55 = arith.constant 0 : index
    %c0_56 = arith.constant 0 : index
    %75 = vector.load %arg11[%c0_55, %c0_56] : memref<1x128xf32, #tpu.memory_space<vmem>>, vector<1x128xf32>
    %76 = vector.broadcast %75 : vector<1x128xf32> to vector<2x128xf32>
    %77 = arith.addf %74, %76 : vector<2x128xf32>
    %78 = tpu.iota {dimensions = array<i32: 1>} : vector<2x128xi32>
    %c7_i32 = arith.constant 7 : i32
    %79 = vector.broadcast %c7_i32 : i32 to vector<2x128xi32>
    %80 = arith.cmpi slt, %78, %79 : vector<2x128xi32>
    %cst_57 = arith.constant -1.000000e+30 : f32
    %81 = vector.broadcast %cst_57 : f32 to vector<2x128xf32>
    %82 = arith.select %80, %77, %81 : vector<2x128xi1>, vector<2x128xf32>
    %cst_58 = arith.constant dense<0xFF800000> : vector<2xf32>
    %83 = vector.multi_reduction <maximumf>, %82, %cst_58 [1] : vector<2x128xf32> to vector<2xf32>
    %84 = vector.shape_cast %83 : vector<2xf32> to vector<2x1xf32>
    %85 = vector.broadcast %84 : vector<2x1xf32> to vector<2x128xf32>
    %86 = arith.subf %82, %85 : vector<2x128xf32>
    %87 = math.exp %86 : vector<2x128xf32>
    %cst_59 = arith.constant dense<0.000000e+00> : vector<2xf32>
    %88 = vector.multi_reduction <add>, %87, %cst_59 [1] : vector<2x128xf32> to vector<2xf32>
    %89 = vector.shape_cast %88 : vector<2xf32> to vector<2x1xf32>
    %90 = math.log %89 : vector<2x1xf32>
    %91 = vector.broadcast %84 : vector<2x1xf32> to vector<2x128xf32>
    %92 = arith.subf %82, %91 : vector<2x128xf32>
    %93 = vector.broadcast %90 : vector<2x1xf32> to vector<2x128xf32>
    %94 = arith.subf %92, %93 : vector<2x128xf32>
    %95 = arith.select %80, %94, %77 : vector<2x128xi1>, vector<2x128xf32>
    %c0_60 = arith.constant 0 : index
    %c0_61 = arith.constant 0 : index
    %96 = vector.load %arg12[%c0_60, %c0_61] : memref<2x128xf32, #tpu.memory_space<vmem>>, vector<2x128xf32>
    tpu.vector_store %arg12[%c0_60, %c0_61], %95 {strides = array<i32>} : memref<2x128xf32, #tpu.memory_space<vmem>>, vector<2x128xf32>,
    return
  }
}

</mosaic_0001>

<llo_original>
// kernel: forward.1
$region0: #{forward.1}
  #allocation0 [shape = 'u32[]', space=smem, size = 0x4, offset = 0x4, fixed_abs, tag = 'smem constant byte address 0x4 - core index']
  #allocation1 [shape = 'u32[144,128]{1,0:T(1,128)}', space=vmem, size = 0x12000, scoped, tag = 'internal scratch']
  #allocation2 [shape = 'bf16[32,96]{1,0:T(16,128)(2,1)}', space=vmem, size = 0x2000, scoped, tag = 'scratch operand']
  #allocation3 [shape = 'bf16[16,448]{1,0:T(16,128)(2,1)}', space=vmem, size = 0x4000, scoped, tag = 'scratch operand']
  #allocation4 [shape = 'bf16[16,384]{1,0:T(16,128)(2,1)}', space=vmem, size = 0x3000, scoped, tag = 'scratch operand']
  #allocation5 [shape = 'bf16[16,1600]{1,0:T(16,128)(2,1)}', space=vmem, size = 0xd000, scoped, tag = 'scratch operand']
  %s0 = inlined_call_operand.vmem [shape: f32[32,48], index: 0, kind: input, shape index: {}]
  %s1 = inlined_call_operand.vmem [shape: bf16[96,240], index: 1, kind: input, shape index: {}]
  %s2 = inlined_call_operand.vmem [shape: f32[1,240], index: 2, kind: input, shape index: {}]
  %s3 = inlined_call_operand.vmem [shape: bf16[16,32], index: 3, kind: input, shape index: {}]
  %s4 = inlined_call_operand.vmem [shape: bf16[448,192], index: 4, kind: input, shape index: {}]
  %s5 = inlined_call_operand.vmem [shape: f32[1,192], index: 5, kind: input, shape index: {}]
  %s6 = inlined_call_operand.vmem [shape: bf16[384,320], index: 6, kind: input, shape index: {}]
  %s7 = inlined_call_operand.vmem [shape: f32[1,320], index: 7, kind: input, shape index: {}]
  %s8 = inlined_call_operand.vmem [shape: bf16[1600,128], index: 8, kind: input, shape index: {}]
  %s9 = inlined_call_operand.vmem [shape: f32[1,128], index: 9, kind: input, shape index: {}]
  %s10 = inlined_call_operand.vmem [shape: bf16[128,128], index: 10, kind: input, shape index: {}]
  %s11 = inlined_call_operand.vmem [shape: f32[1,128], index: 11, kind: input, shape index: {}]
  %s12 = inlined_call_operand.vmem [shape: f32[2,128], index: 12, kind: output, shape index: {}]
  %s13 = sld [smem:[#allocation0]]
  $region58: #{forward.1} parent=0
    _
  %s15 = ssub.s32 1, %s13
  %s16 = scalar_select 0, %s15, %s13
  // Predicated region
  $region2: #{forward.1} parent=0 // pred_check
    _
  $region3: #{forward.1} parent=0 // pred_check_branch
    %18 = sbr.rel (0) target = $region5
  $region4: #{forward.1} parent=0 // pred_region
    _
  $region5: #{forward.1} parent=0 // pred_fallthru
    _
  // Predicated region
  $region6: #{forward.1} parent=0 // pred_check
    _
  $region7: #{forward.1} parent=0 // pred_check_branch
    %20 = sbr.rel (0) target = $region9
  $region8: #{forward.1} parent=0 // pred_region
    _
  $region9: #{forward.1} parent=0 // pred_fallthru
    _
  // Predicated region
  $region10: #{forward.1} parent=0 // pred_check
    _
  $region11: #{forward.1} parent=0 // pred_check_branch
    %22 = sbr.rel (0) target = $region13
  $region12: #{forward.1} parent=0 // pred_region
    _
  $region13: #{forward.1} parent=0 // pred_fallthru
    _
  // Predicated region
  $region14: #{forward.1} parent=0 // pred_check
    _
  $region15: #{forward.1} parent=0 // pred_check_branch
    %24 = sbr.rel (0) target = $region17
  $region16: #{forward.1} parent=0 // pred_region
    _
  $region17: #{forward.1} parent=0 // pred_fallthru
    _
  // Predicated region
  $region18: #{forward.1} parent=0 // pred_check
    _
  $region19: #{forward.1} parent=0 // pred_check_branch
    %26 = sbr.rel (0) target = $region21
  $region20: #{forward.1} parent=0 // pred_region
    _
  $region21: #{forward.1} parent=0 // pred_fallthru
    _
  // Predicated region
  $region22: #{forward.1} parent=0 // pred_check
    _
  $region23: #{forward.1} parent=0 // pred_check_branch
    %28 = sbr.rel (0) target = $region25
  $region24: #{forward.1} parent=0 // pred_region
    _
  $region25: #{forward.1} parent=0 // pred_fallthru
    _
  // Predicated region
  $region26: #{forward.1} parent=0 // pred_check
    _
  $region27: #{forward.1} parent=0 // pred_check_branch
    %30 = sbr.rel (0) target = $region29
  $region28: #{forward.1} parent=0 // pred_region
    _
  $region29: #{forward.1} parent=0 // pred_fallthru
    _
  // Predicated region
  $region30: #{forward.1} parent=0 // pred_check
    _
  $region31: #{forward.1} parent=0 // pred_check_branch
    %32 = sbr.rel (0) target = $region33
  $region32: #{forward.1} parent=0 // pred_region
    _
  $region33: #{forward.1} parent=0 // pred_fallthru
    _
  // Predicated region
  $region34: #{forward.1} parent=0 // pred_check
    _
  $region35: #{forward.1} parent=0 // pred_check_branch
    %34 = sbr.rel (0) target = $region37
  $region36: #{forward.1} parent=0 // pred_region
    _
  $region37: #{forward.1} parent=0 // pred_fallthru
    _
  // Predicated region
  $region38: #{forward.1} parent=0 // pred_check
    _
  $region39: #{forward.1} parent=0 // pred_check_branch
    %36 = sbr.rel (0) target = $region41
  $region40: #{forward.1} parent=0 // pred_region
    _
  $region41: #{forward.1} parent=0 // pred_fallthru
    _
  // Predicated region
  $region42: #{forward.1} parent=0 // pred_check
    _
  $region43: #{forward.1} parent=0 // pred_check_branch
    %38 = sbr.rel (0) target = $region45
  $region44: #{forward.1} parent=0 // pred_region
    _
  $region45: #{forward.1} parent=0 // pred_fallthru
    _
  // Predicated region
  $region46: #{forward.1} parent=0 // pred_check
    _
  $region47: #{forward.1} parent=0 // pred_check_branch
    %40 = sbr.rel (0) target = $region49
  $region48: #{forward.1} parent=0 // pred_region
    _
  $region49: #{forward.1} parent=0 // pred_fallthru
    _
  %v42 = vld [vmem:[%s0] sm:$0xff]
  %v43 = vld [vmem:[%s0 + $0x8] sm:$0xff]
  %v44 = vld [vmem:[%s0 + $0x10] sm:$0xff]
  %v45 = vld [vmem:[%s0 + $0x18] sm:$0xff]
  %v46 = vpack.c.bf16 %v43, %v42
  %v47 = vpack.c.bf16 %v45, %v44
  %vm48 = vcmask 392192
  %49 = vst.msk [vmem:[#allocation2] sm:$0xff] %vm48, %v46
  %50 = vst.msk [vmem:[#allocation2 + $0x8] sm:$0xff] %vm48, %v47
  %v51 = vrot.slane %v42, 1
  %v52 = vrot.slane %v43, 1
  %v53 = vrot.slane %v44, 1
  %v54 = vrot.slane %v45, 1
  %v55 = vlaneseq
  %v56 = vshrl.u32 %v55, 7
  %vm57 = vcmp.lt.s32.totalorder %v56, 7
  %v58 = vsel %vm57, %v53, %v54
  %v59 = vsel %vm57, %v52, %v53
  %v60 = vsel %vm57, %v51, %v52
  %v61 = vsel %vm57, %v54, %v51
  %v62 = vpack.c.bf16 %v59, %v60
  %v63 = vpack.c.bf16 %v61, %v58
  %66 = vrot.lane.b32.xlu0 %v62, 48
  %v67 = vpop.permute.xlu0 %66
  %68 = vrot.lane.b32.xlu0 %v63, 48
  %v69 = vpop.permute.xlu0 %68
  %vm72 = vcmask 785792
  %73 = vst.msk [vmem:[#allocation2] sm:$0xff] %vm72, %v67
  %74 = vst.msk [vmem:[#allocation2 + $0x8] sm:$0xff] %vm72, %v69
  %v75 = vld [vmem:[#allocation2] sm:$0xff]
  %v76 = vld [vmem:[#allocation2 + $0x8] sm:$0xff]
  %v77 = vld [vmem:[%s1] sm:$0xff]
  %v78 = vld [vmem:[%s1 + $0x8] sm:$0xff]
  %v79 = vld [vmem:[%s1 + $0x10] sm:$0xff]
  %v80 = vld [vmem:[%s1 + $0x18] sm:$0xff]
  %v81 = vld [vmem:[%s1 + $0x20] sm:$0xff]
  %v82 = vld [vmem:[%s1 + $0x28] sm:$0xff]
  %v83 = vld [vmem:[%s1 + $0x30] sm:$0xff]
  %v84 = vld [vmem:[%s1 + $0x38] sm:$0xff]
  %v85 = vld [vmem:[%s1 + $0x40] sm:$0xff]
  %v86 = vld [vmem:[%s1 + $0x48] sm:$0xff]
  %v87 = vld [vmem:[%s1 + $0x50] sm:$0xff]
  %v88 = vld [vmem:[%s1 + $0x58] sm:$0xff]
  %v89 = vld [vmem:[%s2] sm:$0x3]
  %v91 = vlaneseq
  %v92 = vshrl.u32 %v91, 7
  %v93 = vsub.s32 0, %v92
  %v94 = vrot.slane %v89, %v93
  %v95 = vlaneseq
  %v96 = vshrl.u32 %v95, 7
  %v97 = vsub.s32 1, %v96
  %v98 = vrot.slane %v89, %v97
  %v113 = vunpack.c.l.b16 %v77
  %v114 = vunpack.c.h.b16 %v77
  %v115 = vunpack.c.l.b16 %v78
  %v116 = vunpack.c.h.b16 %v78
  %v117 = vunpack.c.l.b16 %v79
  %v118 = vunpack.c.h.b16 %v79
  %v119 = vunpack.c.l.b16 %v80
  %v120 = vunpack.c.h.b16 %v80
  %v121 = vunpack.c.l.b16 %v81
  %v122 = vunpack.c.h.b16 %v81
  %v123 = vunpack.c.l.b16 %v82
  %v124 = vunpack.c.h.b16 %v82
  %v125 = vunpack.c.l.b16 %v83
  %v126 = vunpack.c.h.b16 %v83
  %v127 = vunpack.c.l.b16 %v84
  %v128 = vunpack.c.h.b16 %v84
  %v129 = vunpack.c.l.b16 %v85
  %v130 = vunpack.c.h.b16 %v85
  %v131 = vunpack.c.l.b16 %v86
  %v132 = vunpack.c.h.b16 %v86
  %v133 = vunpack.c.l.b16 %v87
  %v134 = vunpack.c.h.b16 %v87
  %v135 = vunpack.c.l.b16 %v88
  %v136 = vunpack.c.h.b16 %v88
  %v137 = vpack.c.b16 %v115, %v113
  %v138 = vpack.c.b16 %v116, %v114
  %v139 = vpack.c.b16 %v119, %v117
  %v140 = vpack.c.b16 %v120, %v118
  %v141 = vpack.c.b16 %v123, %v121
  %v142 = vpack.c.b16 %v124, %v122
  %v143 = vpack.c.b16 %v127, %v125
  %v144 = vpack.c.b16 %v128, %v126
  %v145 = vpack.c.b16 %v131, %v129
  %v146 = vpack.c.b16 %v132, %v130
  %v147 = vpack.c.b16 %v135, %v133
  %v148 = vpack.c.b16 %v136, %v134
  %vm161 = vcmask 785408
  %v163 = vsel %vm161, %v75, 0
  %v166 = vsel %vm161, %v76, 0
  %168 = vmatprep.subr.bf16.mxu0 %v138
  %169 = vmatpush1.bf16.msra.mxu0 %v137
  %170 = vmatprep.subr.bf16.mxu0 %v140
  %171 = vmatpush1.bf16.msra.mxu0 %v139
  %172 = vmatprep.subr.bf16.mxu0 %v142
  %173 = vmatpush1.bf16.msra.mxu0 %v141
  %174 = vmatprep.subr.bf16.mxu0 %v144
  %175 = vmatpush1.bf16.msra.mxu0 %v143
  %176 = vmatprep.subr.bf16.mxu0 %v146
  %177 = vmatpush1.bf16.msra.mxu0 %v145
  %178 = vmatprep.subr.bf16.mxu0 %v148
  %179 = vmatpush1.bf16.msra.mxu0 %v147
  %180 = vmatprep.subr.bf16.mxu0 0
  %181 = vmatpush1.bf16.msra.mxu0 0
  %182 = vmatprep.subr.bf16.mxu0 0
  %183 = vmatpush1.bf16.msra.mxu0 0
  %184 = vmatprep.subr.bf16.mxu0 0
  %185 = vmatpush1.bf16.msra.mxu0 0
  %186 = vmatprep.subr.bf16.mxu0 0
  %187 = vmatpush1.bf16.msra.mxu0 0
  %188 = vmatprep.subr.bf16.mxu0 0
  %189 = vmatpush1.bf16.msra.mxu0 0
  %190 = vmatprep.subr.bf16.mxu0 0
  %191 = vmatpush1.bf16.msra.mxu0 0
  %192 = vmatprep.subr.bf16.mxu0 0
  %193 = vmatpush1.bf16.msra.mxu0 0
  %194 = vmatprep.subr.bf16.mxu0 0
  %195 = vmatpush1.bf16.msra.mxu0 0
  %196 = vmatprep.subr.bf16.mxu0 0
  %197 = vmatpush1.bf16.msra.mxu0 0
  %198 = vmatprep.subr.bf16.mxu0 0
  %199 = vmatpush1.bf16.msra.mxu0 0
  %200 = vmatprep.mubr.bf16.mxu0 0
  %201 = vmatmul.mubr.bf16.gmra.mrb[0].mxu0 %v163
  %v202 = vpop.f32.mrb[0].mxu0
  %v203 = vadd.f32 %v94, %v202
  %v204 = vpop.f32.mrb[0].mxu0
  %v205 = vadd.f32 %v98, %v204
  %v206 = vpop.f32.mrb[0].mxu0
  %v207 = vadd.f32 %v94, %v206
  %v208 = vpop.f32.mrb[0].mxu0
  %v209 = vadd.f32 %v98, %v208
  %210 = vmatprep.mubr.bf16.mxu0 0
  %211 = vmatmul.mubr.bf16.gmra.mrb[0].mxu0 %v166
  %v212 = vpop.f32.mrb[0].mxu0
  %v213 = vadd.f32 %v94, %v212
  %v214 = vpop.f32.mrb[0].mxu0
  %v215 = vadd.f32 %v98, %v214
  %v216 = vpop.f32.mrb[0].mxu0
  %v217 = vadd.f32 %v94, %v216
  %v218 = vpop.f32.mrb[0].mxu0
  %v219 = vadd.f32 %v98, %v218
  %220 = vdwg.mxu0
  %v221 = vmax.f32 %v203, 0.0
  %v222 = vmax.f32 %v205, 0.0
  %v223 = vmax.f32 %v207, 0.0
  %v224 = vmax.f32 %v209, 0.0
  %v225 = vmax.f32 %v213, 0.0
  %v226 = vmax.f32 %v215, 0.0
  %v227 = vmax.f32 %v217, 0.0
  %v228 = vmax.f32 %v219, 0.0
  %v229 = vrot.slane %v221, 1
  %v230 = vrot.slane %v222, 1
  %v231 = vrot.slane %v223, 1
  %v232 = vrot.slane %v224, 1
  %v233 = vrot.slane %v225, 1
  %v234 = vrot.slane %v226, 1
  %v235 = vrot.slane %v227, 1
  %v236 = vrot.slane %v228, 1
  %v237 = vsel %vm57, %v233, %v235
  %v238 = vsel %vm57, %v234, %v236
  %v239 = vsel %vm57, %v231, %v233
  %v240 = vsel %vm57, %v232, %v234
  %v241 = vsel %vm57, %v229, %v231
  %v242 = vsel %vm57, %v230, %v232
  %v243 = vsel %vm57, %v235, %v229
  %v244 = vsel %vm57, %v236, %v230
  %v245 = vmax.f32 %v221, %v241
  %v246 = vmax.f32 %v222, %v242
  %v247 = vmax.f32 %v223, %v239
  %v248 = vmax.f32 %v224, %v240
  %v249 = vmax.f32 %v225, %v237
  %v250 = vmax.f32 %v226, %v238
  %v251 = vmax.f32 %v227, %v243
  %v252 = vmax.f32 %v228, %v244
  %v253 = vld [vmem:[%s3] sm:$0xf]
  %v254 = vld [vmem:[%s3 + $0x4] sm:$0xf]
  %v255 = vpack.c.bf16 %v247, %v245
  %v256 = vpack.c.bf16 %v248, %v246
  %v257 = vpack.c.bf16 %v251, %v249
  %v258 = vpack.c.bf16 %v252, %v250
  %v261 = vunpack.c.l.b16 %v253
  %v262 = vunpack.c.l.b16 %v254
  %v263 = vpack.c.b16 %v262, %v261
  %vm264 = vcmask 261120
  %v266 = vsel %vm264, %v263, 0
  %268 = vmatprep.subr.bf16.mxu0 %v256
  %269 = vmatpush1.bf16.msra.mxu0 %v255
  %270 = vmatprep.subr.bf16.mxu0 %v258
  %271 = vmatpush1.bf16.msra.mxu0 %v257
  %272 = vmatprep.subr.bf16.mxu0 0
  %273 = vmatpush1.bf16.msra.mxu0 0
  %274 = vmatprep.subr.bf16.mxu0 0
  %275 = vmatpush1.bf16.msra.mxu0 0
  %276 = vmatprep.subr.bf16.mxu0 0
  %277 = vmatpush1.bf16.msra.mxu0 0
  %278 = vmatprep.subr.bf16.mxu0 0
  %279 = vmatpush1.bf16.msra.mxu0 0
  %280 = vmatprep.subr.bf16.mxu0 0
  %281 = vmatpush1.bf16.msra.mxu0 0
  %282 = vmatprep.subr.bf16.mxu0 0
  %283 = vmatpush1.bf16.msra.mxu0 0
  %284 = vmatprep.subr.bf16.mxu0 0
  %285 = vmatpush1.bf16.msra.mxu0 0
  %286 = vmatprep.subr.bf16.mxu0 0
  %287 = vmatpush1.bf16.msra.mxu0 0
  %288 = vmatprep.subr.bf16.mxu0 0
  %289 = vmatpush1.bf16.msra.mxu0 0
  %290 = vmatprep.subr.bf16.mxu0 0
  %291 = vmatpush1.bf16.msra.mxu0 0
  %292 = vmatprep.subr.bf16.mxu0 0
  %293 = vmatpush1.bf16.msra.mxu0 0
  %294 = vmatprep.subr.bf16.mxu0 0
  %295 = vmatpush1.bf16.msra.mxu0 0
  %296 = vmatprep.subr.bf16.mxu0 0
  %297 = vmatpush1.bf16.msra.mxu0 0
  %298 = vmatprep.subr.bf16.mxu0 0
  %299 = vmatpush1.bf16.msra.mxu0 0
  %300 = vmatprep.mubr.bf16.mxu0 0
  %301 = vmatmul.mubr.bf16.gmra.mrb[0].mxu0 %v266
  %v302 = vpop.f32.mrb[0].mxu0
  %v303 = vadd.f32 0.0, %v302
  %v304 = vpop.f32.mrb[0].mxu0
  %v305 = vadd.f32 0.0, %v304
  %v306 = vpop.f32.mrb[0].mxu0
  %v307 = vadd.f32 0.0, %v306
  %v308 = vpop.f32.mrb[0].mxu0
  %v309 = vadd.f32 0.0, %v308
  %310 = vdwg.mxu0
  %315 = vrot.lane.b32.xlu0 %v303, 112
  %v316 = vpop.permute.xlu0 %315
  %317 = vrot.lane.b32.xlu0 %v305, 112
  %v318 = vpop.permute.xlu0 %317
  %319 = vrot.lane.b32.xlu0 %v307, 112
  %v320 = vpop.permute.xlu0 %319
  %321 = vrot.lane.b32.xlu0 %v309, 112
  %v322 = vpop.permute.xlu0 %321
  %vm323 = vcmask 916480
  %v324 = vsel %vm323, %v316, %v318
  %v325 = vsel %vm323, %v320, %v322
  %v330 = vmax.f32 %v303, %v324
  %v331 = vmax.f32 %v305, %v318
  %v332 = vmax.f32 %v307, %v325
  %v333 = vmax.f32 %v309, %v322
  %v334 = vpack.c.bf16 %v332, %v330
  %v335 = vpack.c.bf16 %v333, %v331
  %336 = vst [vmem:[#allocation3] sm:$0xff] %v334
  %337 = vst.msk [vmem:[#allocation3 + $0x8] sm:$0xff] %vm161, %v335
  %v338 = vrot.slane %v330, 1
  %v339 = vrot.slane %v331, 1
  %v340 = vrot.slane %v332, 1
  %v341 = vrot.slane %v333, 1
  %v342 = vsel %vm57, %v338, %v340
  %v343 = vsel %vm57, %v339, %v341
  %v344 = vsel %vm57, %v340, %v338
  %v345 = vsel %vm57, %v341, %v339
  %v346 = vpack.c.bf16 %v344, %v342
  %v347 = vpack.c.bf16 %v345, %v343
  %350 = vrot.lane.b32.xlu0 %v346, 96
  %v351 = vpop.permute.xlu0 %350
  %352 = vrot.lane.b32.xlu0 %v347, 96
  %v353 = vpop.permute.xlu0 %352
  %vm354 = vcmask 785408
  %v355 = vsel %vm354, %v351, %v353
  %vm359 = vcmask 1048320
  %360 = vst.msk [vmem:[#allocation3 + $0x8] sm:$0xff] %vm359, %v351
  %361 = vst [vmem:[#allocation3 + $0x10] sm:$0xff] %v355
  %vm362 = vcmask 523264
  %363 = vst.msk [vmem:[#allocation3 + $0x18] sm:$0xff] %vm362, %v353
  %v364 = vld [vmem:[#allocation3] sm:$0xff]
  %v365 = vld [vmem:[#allocation3 + $0x8] sm:$0xff]
  %v366 = vld [vmem:[#allocation3 + $0x10] sm:$0xff]
  %v367 = vld [vmem:[#allocation3 + $0x18] sm:$0xff]
  %v368 = vld [vmem:[%s4] sm:$0xff]
  %v369 = vld [vmem:[%s4 + $0x8] sm:$0xff]
  %v370 = vld [vmem:[%s4 + $0x10] sm:$0xff]
  %v371 = vld [vmem:[%s4 + $0x18] sm:$0xff]
  %v372 = vld [vmem:[%s4 + $0x20] sm:$0xff]
  %v373 = vld [vmem:[%s4 + $0x28] sm:$0xff]
  %v374 = vld [vmem:[%s4 + $0x30] sm:$0xff]
  %v375 = vld [vmem:[%s4 + $0x38] sm:$0xff]
  %v376 = vld [vmem:[%s4 + $0x40] sm:$0xff]
  %v377 = vld [vmem:[%s4 + $0x48] sm:$0xff]
  %v378 = vld [vmem:[%s4 + $0x50] sm:$0xff]
  %v379 = vld [vmem:[%s4 + $0x58] sm:$0xff]
  %v380 = vld [vmem:[%s4 + $0x60] sm:$0xff]
  %v381 = vld [vmem:[%s4 + $0x68] sm:$0xff]
  %v382 = vld [vmem:[%s4 + $0x70] sm:$0xff]
  %v383 = vld [vmem:[%s4 + $0x78] sm:$0xff]
  %v384 = vld [vmem:[%s4 + $0x80] sm:$0xff]
  %v385 = vld [vmem:[%s4 + $0x88] sm:$0xff]
  %v386 = vld [vmem:[%s4 + $0x90] sm:$0xff]
  %v387 = vld [vmem:[%s4 + $0x98] sm:$0xff]
  %v388 = vld [vmem:[%s4 + $0xa0] sm:$0xff]
  %v389 = vld [vmem:[%s4 + $0xa8] sm:$0xff]
  %v390 = vld [vmem:[%s4 + $0xb0] sm:$0xff]
  %v391 = vld [vmem:[%s4 + $0xb8] sm:$0xff]
  %v392 = vld [vmem:[%s4 + $0xc0] sm:$0xff]
  %v393 = vld [vmem:[%s4 + $0xc8] sm:$0xff]
  %v394 = vld [vmem:[%s4 + $0xd0] sm:$0xff]
  %v395 = vld [vmem:[%s4 + $0xd8] sm:$0xff]
  %v396 = vld [vmem:[%s4 + $0xe0] sm:$0xff]
  %v397 = vld [vmem:[%s4 + $0xe8] sm:$0xff]
  %v398 = vld [vmem:[%s4 + $0xf0] sm:$0xff]
  %v399 = vld [vmem:[%s4 + $0xf8] sm:$0xff]
  %v400 = vld [vmem:[%s4 + $0x100] sm:$0xff]
  %v401 = vld [vmem:[%s4 + $0x108] sm:$0xff]
  %v402 = vld [vmem:[%s4 + $0x110] sm:$0xff]
  %v403 = vld [vmem:[%s4 + $0x118] sm:$0xff]
  %v404 = vld [vmem:[%s4 + $0x120] sm:$0xff]
  %v405 = vld [vmem:[%s4 + $0x128] sm:$0xff]
  %v406 = vld [vmem:[%s4 + $0x130] sm:$0xff]
  %v407 = vld [vmem:[%s4 + $0x138] sm:$0xff]
  %v408 = vld [vmem:[%s4 + $0x140] sm:$0xff]
  %v409 = vld [vmem:[%s4 + $0x148] sm:$0xff]
  %v410 = vld [vmem:[%s4 + $0x150] sm:$0xff]
  %v411 = vld [vmem:[%s4 + $0x158] sm:$0xff]
  %v412 = vld [vmem:[%s4 + $0x160] sm:$0xff]
  %v413 = vld [vmem:[%s4 + $0x168] sm:$0xff]
  %v414 = vld [vmem:[%s4 + $0x170] sm:$0xff]
  %v415 = vld [vmem:[%s4 + $0x178] sm:$0xff]
  %v416 = vld [vmem:[%s4 + $0x180] sm:$0xff]
  %v417 = vld [vmem:[%s4 + $0x188] sm:$0xff]
  %v418 = vld [vmem:[%s4 + $0x190] sm:$0xff]
  %v419 = vld [vmem:[%s4 + $0x198] sm:$0xff]
  %v420 = vld [vmem:[%s4 + $0x1a0] sm:$0xff]
  %v421 = vld [vmem:[%s4 + $0x1a8] sm:$0xff]
  %v422 = vld [vmem:[%s4 + $0x1b0] sm:$0xff]
  %v423 = vld [vmem:[%s4 + $0x1b8] sm:$0xff]
  %v424 = vld [vmem:[%s5] sm:$0x3]
  %v426 = vlaneseq
  %v427 = vshrl.u32 %v426, 7
  %v428 = vsub.s32 0, %v427
  %v429 = vrot.slane %v424, %v428
  %v430 = vlaneseq
  %v431 = vshrl.u32 %v430, 7
  %v432 = vsub.s32 1, %v431
  %v433 = vrot.slane %v424, %v432
  %v492 = vunpack.c.l.b16 %v368
  %v493 = vunpack.c.h.b16 %v368
  %v494 = vunpack.c.l.b16 %v369
  %v495 = vunpack.c.h.b16 %v369
  %v496 = vunpack.c.l.b16 %v370
  %v497 = vunpack.c.h.b16 %v370
  %v498 = vunpack.c.l.b16 %v371
  %v499 = vunpack.c.h.b16 %v371
  %v500 = vunpack.c.l.b16 %v372
  %v501 = vunpack.c.h.b16 %v372
  %v502 = vunpack.c.l.b16 %v373
  %v503 = vunpack.c.h.b16 %v373
  %v504 = vunpack.c.l.b16 %v374
  %v505 = vunpack.c.h.b16 %v374
  %v506 = vunpack.c.l.b16 %v375
  %v507 = vunpack.c.h.b16 %v375
  %v508 = vunpack.c.l.b16 %v376
  %v509 = vunpack.c.h.b16 %v376
  %v510 = vunpack.c.l.b16 %v377
  %v511 = vunpack.c.h.b16 %v377
  %v512 = vunpack.c.l.b16 %v378
  %v513 = vunpack.c.h.b16 %v378
  %v514 = vunpack.c.l.b16 %v379
  %v515 = vunpack.c.h.b16 %v379
  %v516 = vunpack.c.l.b16 %v380
  %v517 = vunpack.c.h.b16 %v380
  %v518 = vunpack.c.l.b16 %v381
  %v519 = vunpack.c.h.b16 %v381
  %v520 = vunpack.c.l.b16 %v382
  %v521 = vunpack.c.h.b16 %v382
  %v522 = vunpack.c.l.b16 %v383
  %v523 = vunpack.c.h.b16 %v383
  %v524 = vunpack.c.l.b16 %v384
  %v525 = vunpack.c.h.b16 %v384
  %v526 = vunpack.c.l.b16 %v385
  %v527 = vunpack.c.h.b16 %v385
  %v528 = vunpack.c.l.b16 %v386
  %v529 = vunpack.c.h.b16 %v386
  %v530 = vunpack.c.l.b16 %v387
  %v531 = vunpack.c.h.b16 %v387
  %v532 = vunpack.c.l.b16 %v388
  %v533 = vunpack.c.h.b16 %v388
  %v534 = vunpack.c.l.b16 %v389
  %v535 = vunpack.c.h.b16 %v389
  %v536 = vunpack.c.l.b16 %v390
  %v537 = vunpack.c.h.b16 %v390
  %v538 = vunpack.c.l.b16 %v391
  %v539 = vunpack.c.h.b16 %v391
  %v540 = vunpack.c.l.b16 %v392
  %v541 = vunpack.c.h.b16 %v392
  %v542 = vunpack.c.l.b16 %v393
  %v543 = vunpack.c.h.b16 %v393
  %v544 = vunpack.c.l.b16 %v394
  %v545 = vunpack.c.h.b16 %v394
  %v546 = vunpack.c.l.b16 %v395
  %v547 = vunpack.c.h.b16 %v395
  %v548 = vunpack.c.l.b16 %v396
  %v549 = vunpack.c.h.b16 %v396
  %v550 = vunpack.c.l.b16 %v397
  %v551 = vunpack.c.h.b16 %v397
  %v552 = vunpack.c.l.b16 %v398
  %v553 = vunpack.c.h.b16 %v398
  %v554 = vunpack.c.l.b16 %v399
  %v555 = vunpack.c.h.b16 %v399
  %v556 = vunpack.c.l.b16 %v400
  %v557 = vunpack.c.h.b16 %v400
  %v558 = vunpack.c.l.b16 %v401
  %v559 = vunpack.c.h.b16 %v401
  %v560 = vunpack.c.l.b16 %v402
  %v561 = vunpack.c.h.b16 %v402
  %v562 = vunpack.c.l.b16 %v403
  %v563 = vunpack.c.h.b16 %v403
  %v564 = vunpack.c.l.b16 %v404
  %v565 = vunpack.c.h.b16 %v404
  %v566 = vunpack.c.l.b16 %v405
  %v567 = vunpack.c.h.b16 %v405
  %v568 = vunpack.c.l.b16 %v406
  %v569 = vunpack.c.h.b16 %v406
  %v570 = vunpack.c.l.b16 %v407
  %v571 = vunpack.c.h.b16 %v407
  %v572 = vunpack.c.l.b16 %v408
  %v573 = vunpack.c.h.b16 %v408
  %v574 = vunpack.c.l.b16 %v409
  %v575 = vunpack.c.h.b16 %v409
  %v576 = vunpack.c.l.b16 %v410
  %v577 = vunpack.c.h.b16 %v410
  %v578 = vunpack.c.l.b16 %v411
  %v579 = vunpack.c.h.b16 %v411
  %v580 = vunpack.c.l.b16 %v412
  %v581 = vunpack.c.h.b16 %v412
  %v582 = vunpack.c.l.b16 %v413
  %v583 = vunpack.c.h.b16 %v413
  %v584 = vunpack.c.l.b16 %v414
  %v585 = vunpack.c.h.b16 %v414
  %v586 = vunpack.c.l.b16 %v415
  %v587 = vunpack.c.h.b16 %v415
  %v588 = vunpack.c.l.b16 %v416
  %v589 = vunpack.c.h.b16 %v416
  %v590 = vunpack.c.l.b16 %v417
  %v591 = vunpack.c.h.b16 %v417
  %v592 = vunpack.c.l.b16 %v418
  %v593 = vunpack.c.h.b16 %v418
  %v594 = vunpack.c.l.b16 %v419
  %v595 = vunpack.c.h.b16 %v419
  %v596 = vunpack.c.l.b16 %v420
  %v597 = vunpack.c.h.b16 %v420
  %v598 = vunpack.c.l.b16 %v421
  %v599 = vunpack.c.h.b16 %v421
  %v600 = vunpack.c.l.b16 %v422
  %v601 = vunpack.c.h.b16 %v422
  %v602 = vunpack.c.l.b16 %v423
  %v603 = vunpack.c.h.b16 %v423
  %v604 = vpack.c.b16 %v494, %v492
  %v605 = vpack.c.b16 %v495, %v493
  %v606 = vpack.c.b16 %v498, %v496
  %v607 = vpack.c.b16 %v499, %v497
  %v608 = vpack.c.b16 %v502, %v500
  %v609 = vpack.c.b16 %v503, %v501
  %v610 = vpack.c.b16 %v506, %v504
  %v611 = vpack.c.b16 %v507, %v505
  %v612 = vpack.c.b16 %v510, %v508
  %v613 = vpack.c.b16 %v511, %v509
  %v614 = vpack.c.b16 %v514, %v512
  %v615 = vpack.c.b16 %v515, %v513
  %v616 = vpack.c.b16 %v518, %v516
  %v617 = vpack.c.b16 %v519, %v517
  %v618 = vpack.c.b16 %v522, %v520
  %v619 = vpack.c.b16 %v523, %v521
  %v620 = vpack.c.b16 %v526, %v524
  %v621 = vpack.c.b16 %v527, %v525
  %v622 = vpack.c.b16 %v530, %v528
  %v623 = vpack.c.b16 %v531, %v529
  %v624 = vpack.c.b16 %v534, %v532
  %v625 = vpack.c.b16 %v535, %v533
  %v626 = vpack.c.b16 %v538, %v536
  %v627 = vpack.c.b16 %v539, %v537
  %v628 = vpack.c.b16 %v542, %v540
  %v629 = vpack.c.b16 %v543, %v541
  %v630 = vpack.c.b16 %v546, %v544
  %v631 = vpack.c.b16 %v547, %v545
  %v632 = vpack.c.b16 %v550, %v548
  %v633 = vpack.c.b16 %v551, %v549
  %v634 = vpack.c.b16 %v554, %v552
  %v635 = vpack.c.b16 %v555, %v553
  %v636 = vpack.c.b16 %v558, %v556
  %v637 = vpack.c.b16 %v559, %v557
  %v638 = vpack.c.b16 %v562, %v560
  %v639 = vpack.c.b16 %v563, %v561
  %v640 = vpack.c.b16 %v566, %v564
  %v641 = vpack.c.b16 %v567, %v565
  %v642 = vpack.c.b16 %v570, %v568
  %v643 = vpack.c.b16 %v571, %v569
  %v644 = vpack.c.b16 %v574, %v572
  %v645 = vpack.c.b16 %v575, %v573
  %v646 = vpack.c.b16 %v578, %v576
  %v647 = vpack.c.b16 %v579, %v577
  %v648 = vpack.c.b16 %v582, %v580
  %v649 = vpack.c.b16 %v583, %v581
  %v650 = vpack.c.b16 %v586, %v584
  %v651 = vpack.c.b16 %v587, %v585
  %v652 = vpack.c.b16 %v590, %v588
  %v653 = vpack.c.b16 %v591, %v589
  %v654 = vpack.c.b16 %v594, %v592
  %v655 = vpack.c.b16 %v595, %v593
  %v656 = vpack.c.b16 %v598, %v596
  %v657 = vpack.c.b16 %v599, %v597
  %v658 = vpack.c.b16 %v602, %v600
  %v659 = vpack.c.b16 %v603, %v601
  %v717 = vsel %vm362, %v367, 0
  %719 = vmatprep.subr.bf16.mxu0 %v605
  %720 = vmatpush1.bf16.msra.mxu0 %v604
  %721 = vmatprep.subr.bf16.mxu0 %v607
  %722 = vmatpush1.bf16.msra.mxu0 %v606
  %723 = vmatprep.subr.bf16.mxu0 %v609
  %724 = vmatpush1.bf16.msra.mxu0 %v608
  %725 = vmatprep.subr.bf16.mxu0 %v611
  %726 = vmatpush1.bf16.msra.mxu0 %v610
  %727 = vmatprep.subr.bf16.mxu0 %v613
  %728 = vmatpush1.bf16.msra.mxu0 %v612
  %729 = vmatprep.subr.bf16.mxu0 %v615
  %730 = vmatpush1.bf16.msra.mxu0 %v614
  %731 = vmatprep.subr.bf16.mxu0 %v617
  %732 = vmatpush1.bf16.msra.mxu0 %v616
  %733 = vmatprep.subr.bf16.mxu0 %v619
  %734 = vmatpush1.bf16.msra.mxu0 %v618
  %735 = vmatprep.subr.bf16.mxu0 %v621
  %736 = vmatpush1.bf16.msra.mxu0 %v620
  %737 = vmatprep.subr.bf16.mxu0 %v623
  %738 = vmatpush1.bf16.msra.mxu0 %v622
  %739 = vmatprep.subr.bf16.mxu0 %v625
  %740 = vmatpush1.bf16.msra.mxu0 %v624
  %741 = vmatprep.subr.bf16.mxu0 %v627
  %742 = vmatpush1.bf16.msra.mxu0 %v626
  %743 = vmatprep.subr.bf16.mxu0 %v629
  %744 = vmatpush1.bf16.msra.mxu0 %v628
  %745 = vmatprep.subr.bf16.mxu0 %v631
  %746 = vmatpush1.bf16.msra.mxu0 %v630
  %747 = vmatprep.subr.bf16.mxu0 %v633
  %748 = vmatpush1.bf16.msra.mxu0 %v632
  %749 = vmatprep.subr.bf16.mxu0 %v635
  %750 = vmatpush1.bf16.msra.mxu0 %v634
  %751 = vmatprep.mubr.bf16.mxu0 %v365
  %752 = vmatmul.mubr.bf16.gmra.mrb[0].mxu0 %v364
  %v753 = vpop.f32.mrb[0].mxu0
  %v754 = vadd.f32 %v429, %v753
  %v755 = vpop.f32.mrb[0].mxu0
  %v756 = vadd.f32 %v433, %v755
  %v757 = vpop.f32.mrb[0].mxu0
  %v758 = vadd.f32 %v429, %v757
  %v759 = vpop.f32.mrb[0].mxu0
  %v760 = vadd.f32 %v433, %v759
  %761 = vdwg.mxu0
  %762 = vmatprep.subr.bf16.mxu0 %v637
  %763 = vmatpush1.bf16.msra.mxu0 %v636
  %764 = vmatprep.subr.bf16.mxu0 %v639
  %765 = vmatpush1.bf16.msra.mxu0 %v638
  %766 = vmatprep.subr.bf16.mxu0 %v641
  %767 = vmatpush1.bf16.msra.mxu0 %v640
  %768 = vmatprep.subr.bf16.mxu0 %v643
  %769 = vmatpush1.bf16.msra.mxu0 %v642
  %770 = vmatprep.subr.bf16.mxu0 %v645
  %771 = vmatpush1.bf16.msra.mxu0 %v644
  %772 = vmatprep.subr.bf16.mxu0 %v647
  %773 = vmatpush1.bf16.msra.mxu0 %v646
  %774 = vmatprep.subr.bf16.mxu0 %v649
  %775 = vmatpush1.bf16.msra.mxu0 %v648
  %776 = vmatprep.subr.bf16.mxu0 %v651
  %777 = vmatpush1.bf16.msra.mxu0 %v650
  %778 = vmatprep.subr.bf16.mxu0 %v653
  %779 = vmatpush1.bf16.msra.mxu0 %v652
  %780 = vmatprep.subr.bf16.mxu0 %v655
  %781 = vmatpush1.bf16.msra.mxu0 %v654
  %782 = vmatprep.subr.bf16.mxu0 %v657
  %783 = vmatpush1.bf16.msra.mxu0 %v656
  %784 = vmatprep.subr.bf16.mxu0 %v659
  %785 = vmatpush1.bf16.msra.mxu0 %v658
  %786 = vmatprep.subr.bf16.mxu0 0
  %787 = vmatpush1.bf16.msra.mxu0 0
  %788 = vmatprep.subr.bf16.mxu0 0
  %789 = vmatpush1.bf16.msra.mxu0 0
  %790 = vmatprep.subr.bf16.mxu0 0
  %791 = vmatpush1.bf16.msra.mxu0 0
  %792 = vmatprep.subr.bf16.mxu0 0
  %793 = vmatpush1.bf16.msra.mxu0 0
  %794 = vmatprep.mubr.bf16.mxu0 %v717
  %795 = vmatmul.mubr.bf16.gmra.mrb[0].mxu0 %v366
  %v796 = vpop.f32.mrb[0].mxu0
  %v797 = vadd.f32 %v754, %v796
  %v798 = vpop.f32.mrb[0].mxu0
  %v799 = vadd.f32 %v756, %v798
  %v800 = vpop.f32.mrb[0].mxu0
  %v801 = vadd.f32 %v758, %v800
  %v802 = vpop.f32.mrb[0].mxu0
  %v803 = vadd.f32 %v760, %v802
  %804 = vdwg.mxu0
  %v805 = vmax.f32 %v797, 0.0
  %v806 = vmax.f32 %v799, 0.0
  %v807 = vmax.f32 %v801, 0.0
  %v808 = vmax.f32 %v803, 0.0
  %v809 = vpack.c.bf16 %v807, %v805
  %v810 = vpack.c.bf16 %v808, %v806
  %811 = vst [vmem:[#allocation4] sm:$0xff] %v809
  %812 = vst.msk [vmem:[#allocation4 + $0x8] sm:$0xff] %vm362, %v810
  %v813 = vrot.slane %v805, 1
  %v814 = vrot.slane %v806, 1
  %v815 = vrot.slane %v807, 1
  %v816 = vrot.slane %v808, 1
  %v817 = vsel %vm57, %v813, %v815
  %v818 = vsel %vm57, %v814, %v816
  %v819 = vsel %vm57, %v815, %v813
  %v820 = vsel %vm57, %v816, %v814
  %v821 = vpack.c.bf16 %v819, %v817
  %v822 = vpack.c.bf16 %v820, %v818
  %825 = vrot.lane.b32.xlu0 %v821, 64
  %v826 = vpop.permute.xlu0 %825
  %827 = vrot.lane.b32.xlu0 %v822, 64
  %v828 = vpop.permute.xlu0 %827
  %vm829 = vcmask 523264
  %v830 = vsel %vm829, %v826, %v828
  %vm833 = vcmask 1048064
  %834 = vst.msk [vmem:[#allocation4 + $0x8] sm:$0xff] %vm833, %v826
  %835 = vst [vmem:[#allocation4 + $0x10] sm:$0xff] %v830
  %v836 = vld [vmem:[#allocation4] sm:$0xff]
  %v837 = vld [vmem:[#allocation4 + $0x8] sm:$0xff]
  %v838 = vld [vmem:[#allocation4 + $0x10] sm:$0xff]
  %v839 = vld [vmem:[%s6] sm:$0xff]
  %v840 = vld [vmem:[%s6 + $0x8] sm:$0xf]
  %v841 = vld [vmem:[%s6 + $0xc] sm:$0xff]
  %v842 = vld [vmem:[%s6 + $0x14] sm:$0xf]
  %v843 = vld [vmem:[%s6 + $0x18] sm:$0xff]
  %v844 = vld [vmem:[%s6 + $0x20] sm:$0xf]
  %v845 = vld [vmem:[%s6 + $0x24] sm:$0xff]
  %v846 = vld [vmem:[%s6 + $0x2c] sm:$0xf]
  %v847 = vld [vmem:[%s6 + $0x30] sm:$0xff]
  %v848 = vld [vmem:[%s6 + $0x38] sm:$0xf]
  %v849 = vld [vmem:[%s6 + $0x3c] sm:$0xff]
  %v850 = vld [vmem:[%s6 + $0x44] sm:$0xf]
  %v851 = vld [vmem:[%s6 + $0x48] sm:$0xff]
  %v852 = vld [vmem:[%s6 + $0x50] sm:$0xf]
  %v853 = vld [vmem:[%s6 + $0x54] sm:$0xff]
  %v854 = vld [vmem:[%s6 + $0x5c] sm:$0xf]
  %v855 = vld [vmem:[%s6 + $0x60] sm:$0xff]
  %v856 = vld [vmem:[%s6 + $0x68] sm:$0xf]
  %v857 = vld [vmem:[%s6 + $0x6c] sm:$0xff]
  %v858 = vld [vmem:[%s6 + $0x74] sm:$0xf]
  %v859 = vld [vmem:[%s6 + $0x78] sm:$0xff]
  %v860 = vld [vmem:[%s6 + $0x80] sm:$0xf]
  %v861 = vld [vmem:[%s6 + $0x84] sm:$0xff]
  %v862 = vld [vmem:[%s6 + $0x8c] sm:$0xf]
  %v863 = vld [vmem:[%s6 + $0x90] sm:$0xff]
  %v864 = vld [vmem:[%s6 + $0x98] sm:$0xf]
  %v865 = vld [vmem:[%s6 + $0x9c] sm:$0xff]
  %v866 = vld [vmem:[%s6 + $0xa4] sm:$0xf]
  %v867 = vld [vmem:[%s6 + $0xa8] sm:$0xff]
  %v868 = vld [vmem:[%s6 + $0xb0] sm:$0xf]
  %v869 = vld [vmem:[%s6 + $0xb4] sm:$0xff]
  %v870 = vld [vmem:[%s6 + $0xbc] sm:$0xf]
  %v871 = vld [vmem:[%s6 + $0xc0] sm:$0xff]
  %v872 = vld [vmem:[%s6 + $0xc8] sm:$0xf]
  %v873 = vld [vmem:[%s6 + $0xcc] sm:$0xff]
  %v874 = vld [vmem:[%s6 + $0xd4] sm:$0xf]
  %v875 = vld [vmem:[%s6 + $0xd8] sm:$0xff]
  %v876 = vld [vmem:[%s6 + $0xe0] sm:$0xf]
  %v877 = vld [vmem:[%s6 + $0xe4] sm:$0xff]
  %v878 = vld [vmem:[%s6 + $0xec] sm:$0xf]
  %v879 = vld [vmem:[%s6 + $0xf0] sm:$0xff]
  %v880 = vld [vmem:[%s6 + $0xf8] sm:$0xf]
  %v881 = vld [vmem:[%s6 + $0xfc] sm:$0xff]
  %v882 = vld [vmem:[%s6 + $0x104] sm:$0xf]
  %v883 = vld [vmem:[%s6 + $0x108] sm:$0xff]
  %v884 = vld [vmem:[%s6 + $0x110] sm:$0xf]
  %v885 = vld [vmem:[%s6 + $0x114] sm:$0xff]
  %v886 = vld [vmem:[%s6 + $0x11c] sm:$0xf]
  %v887 = vld [vmem:[%s6 + $0x120] sm:$0xff]
  %v888 = vld [vmem:[%s6 + $0x128] sm:$0xf]
  %v889 = vld [vmem:[%s6 + $0x12c] sm:$0xff]
  %v890 = vld [vmem:[%s6 + $0x134] sm:$0xf]
  %v891 = vld [vmem:[%s6 + $0x138] sm:$0xff]
  %v892 = vld [vmem:[%s6 + $0x140] sm:$0xf]
  %v893 = vld [vmem:[%s6 + $0x144] sm:$0xff]
  %v894 = vld [vmem:[%s6 + $0x14c] sm:$0xf]
  %v895 = vld [vmem:[%s6 + $0x150] sm:$0xff]
  %v896 = vld [vmem:[%s6 + $0x158] sm:$0xf]
  %v897 = vld [vmem:[%s6 + $0x15c] sm:$0xff]
  %v898 = vld [vmem:[%s6 + $0x164] sm:$0xf]
  %v899 = vld [vmem:[%s6 + $0x168] sm:$0xff]
  %v900 = vld [vmem:[%s6 + $0x170] sm:$0xf]
  %v901 = vld [vmem:[%s6 + $0x174] sm:$0xff]
  %v902 = vld [vmem:[%s6 + $0x17c] sm:$0xf]
  %v903 = vld [vmem:[%s6 + $0x180] sm:$0xff]
  %v904 = vld [vmem:[%s6 + $0x188] sm:$0xf]
  %v905 = vld [vmem:[%s6 + $0x18c] sm:$0xff]
  %v906 = vld [vmem:[%s6 + $0x194] sm:$0xf]
  %v907 = vld [vmem:[%s6 + $0x198] sm:$0xff]
  %v908 = vld [vmem:[%s6 + $0x1a0] sm:$0xf]
  %v909 = vld [vmem:[%s6 + $0x1a4] sm:$0xff]
  %v910 = vld [vmem:[%s6 + $0x1ac] sm:$0xf]
  %v911 = vld [vmem:[%s6 + $0x1b0] sm:$0xff]
  %v912 = vld [vmem:[%s6 + $0x1b8] sm:$0xf]
  %v913 = vld [vmem:[%s6 + $0x1bc] sm:$0xff]
  %v914 = vld [vmem:[%s6 + $0x1c4] sm:$0xf]
  %v915 = vld [vmem:[%s6 + $0x1c8] sm:$0xff]
  %v916 = vld [vmem:[%s6 + $0x1d0] sm:$0xf]
  %v917 = vld [vmem:[%s6 + $0x1d4] sm:$0xff]
  %v918 = vld [vmem:[%s6 + $0x1dc] sm:$0xf]
  %v919 = vld [vmem:[%s6 + $0x1e0] sm:$0xff]
  %v920 = vld [vmem:[%s6 + $0x1e8] sm:$0xf]
  %v921 = vld [vmem:[%s6 + $0x1ec] sm:$0xff]
  %v922 = vld [vmem:[%s6 + $0x1f4] sm:$0xf]
  %v923 = vld [vmem:[%s6 + $0x1f8] sm:$0xff]
  %v924 = vld [vmem:[%s6 + $0x200] sm:$0xf]
  %v925 = vld [vmem:[%s6 + $0x204] sm:$0xff]
  %v926 = vld [vmem:[%s6 + $0x20c] sm:$0xf]
  %v927 = vld [vmem:[%s6 + $0x210] sm:$0xff]
  %v928 = vld [vmem:[%s6 + $0x218] sm:$0xf]
  %v929 = vld [vmem:[%s6 + $0x21c] sm:$0xff]
  %v930 = vld [vmem:[%s6 + $0x224] sm:$0xf]
  %v931 = vld [vmem:[%s6 + $0x228] sm:$0xff]
  %v932 = vld [vmem:[%s6 + $0x230] sm:$0xf]
  %v933 = vld [vmem:[%s6 + $0x234] sm:$0xff]
  %v934 = vld [vmem:[%s6 + $0x23c] sm:$0xf]
  %v935 = vld [vmem:[%s7] sm:$0x7]
  %v937 = vlaneseq
  %v938 = vshrl.u32 %v937, 7
  %v939 = vsub.s32 0, %v938
  %v940 = vrot.slane %v935, %v939
  %v941 = vlaneseq
  %v942 = vshrl.u32 %v941, 7
  %v943 = vsub.s32 1, %v942
  %v944 = vrot.slane %v935, %v943
  %v945 = vlaneseq
  %v946 = vshrl.u32 %v945, 7
  %v947 = vsub.s32 2, %v946
  %v948 = vrot.slane %v935, %v947
  %v1048 = vunpack.c.l.b16 %v839
  %v1049 = vunpack.c.h.b16 %v839
  %v1050 = vunpack.c.l.b16 %v840
  %v1051 = vunpack.c.l.b16 %v841
  %v1052 = vunpack.c.h.b16 %v841
  %v1053 = vunpack.c.l.b16 %v842
  %v1054 = vunpack.c.l.b16 %v843
  %v1055 = vunpack.c.h.b16 %v843
  %v1056 = vunpack.c.l.b16 %v844
  %v1057 = vunpack.c.l.b16 %v845
  %v1058 = vunpack.c.h.b16 %v845
  %v1059 = vunpack.c.l.b16 %v846
  %v1060 = vunpack.c.l.b16 %v847
  %v1061 = vunpack.c.h.b16 %v847
  %v1062 = vunpack.c.l.b16 %v848
  %v1063 = vunpack.c.l.b16 %v849
  %v1064 = vunpack.c.h.b16 %v849
  %v1065 = vunpack.c.l.b16 %v850
  %v1066 = vunpack.c.l.b16 %v851
  %v1067 = vunpack.c.h.b16 %v851
  %v1068 = vunpack.c.l.b16 %v852
  %v1069 = vunpack.c.l.b16 %v853
  %v1070 = vunpack.c.h.b16 %v853
  %v1071 = vunpack.c.l.b16 %v854
  %v1072 = vunpack.c.l.b16 %v855
  %v1073 = vunpack.c.h.b16 %v855
  %v1074 = vunpack.c.l.b16 %v856
  %v1075 = vunpack.c.l.b16 %v857
  %v1076 = vunpack.c.h.b16 %v857
  %v1077 = vunpack.c.l.b16 %v858
  %v1078 = vunpack.c.l.b16 %v859
  %v1079 = vunpack.c.h.b16 %v859
  %v1080 = vunpack.c.l.b16 %v860
  %v1081 = vunpack.c.l.b16 %v861
  %v1082 = vunpack.c.h.b16 %v861
  %v1083 = vunpack.c.l.b16 %v862
  %v1084 = vunpack.c.l.b16 %v863
  %v1085 = vunpack.c.h.b16 %v863
  %v1086 = vunpack.c.l.b16 %v864
  %v1087 = vunpack.c.l.b16 %v865
  %v1088 = vunpack.c.h.b16 %v865
  %v1089 = vunpack.c.l.b16 %v866
  %v1090 = vunpack.c.l.b16 %v867
  %v1091 = vunpack.c.h.b16 %v867
  %v1092 = vunpack.c.l.b16 %v868
  %v1093 = vunpack.c.l.b16 %v869
  %v1094 = vunpack.c.h.b16 %v869
  %v1095 = vunpack.c.l.b16 %v870
  %v1096 = vunpack.c.l.b16 %v871
  %v1097 = vunpack.c.h.b16 %v871
  %v1098 = vunpack.c.l.b16 %v872
  %v1099 = vunpack.c.l.b16 %v873
  %v1100 = vunpack.c.h.b16 %v873
  %v1101 = vunpack.c.l.b16 %v874
  %v1102 = vunpack.c.l.b16 %v875
  %v1103 = vunpack.c.h.b16 %v875
  %v1104 = vunpack.c.l.b16 %v876
  %v1105 = vunpack.c.l.b16 %v877
  %v1106 = vunpack.c.h.b16 %v877
  %v1107 = vunpack.c.l.b16 %v878
  %v1108 = vunpack.c.l.b16 %v879
  %v1109 = vunpack.c.h.b16 %v879
  %v1110 = vunpack.c.l.b16 %v880
  %v1111 = vunpack.c.l.b16 %v881
  %v1112 = vunpack.c.h.b16 %v881
  %v1113 = vunpack.c.l.b16 %v882
  %v1114 = vunpack.c.l.b16 %v883
  %v1115 = vunpack.c.h.b16 %v883
  %v1116 = vunpack.c.l.b16 %v884
  %v1117 = vunpack.c.l.b16 %v885
  %v1118 = vunpack.c.h.b16 %v885
  %v1119 = vunpack.c.l.b16 %v886
  %v1120 = vunpack.c.l.b16 %v887
  %v1121 = vunpack.c.h.b16 %v887
  %v1122 = vunpack.c.l.b16 %v888
  %v1123 = vunpack.c.l.b16 %v889
  %v1124 = vunpack.c.h.b16 %v889
  %v1125 = vunpack.c.l.b16 %v890
  %v1126 = vunpack.c.l.b16 %v891
  %v1127 = vunpack.c.h.b16 %v891
  %v1128 = vunpack.c.l.b16 %v892
  %v1129 = vunpack.c.l.b16 %v893
  %v1130 = vunpack.c.h.b16 %v893
  %v1131 = vunpack.c.l.b16 %v894
  %v1132 = vunpack.c.l.b16 %v895
  %v1133 = vunpack.c.h.b16 %v895
  %v1134 = vunpack.c.l.b16 %v896
  %v1135 = vunpack.c.l.b16 %v897
  %v1136 = vunpack.c.h.b16 %v897
  %v1137 = vunpack.c.l.b16 %v898
  %v1138 = vunpack.c.l.b16 %v899
  %v1139 = vunpack.c.h.b16 %v899
  %v1140 = vunpack.c.l.b16 %v900
  %v1141 = vunpack.c.l.b16 %v901
  %v1142 = vunpack.c.h.b16 %v901
  %v1143 = vunpack.c.l.b16 %v902
  %v1144 = vunpack.c.l.b16 %v903
  %v1145 = vunpack.c.h.b16 %v903
  %v1146 = vunpack.c.l.b16 %v904
  %v1147 = vunpack.c.l.b16 %v905
  %v1148 = vunpack.c.h.b16 %v905
  %v1149 = vunpack.c.l.b16 %v906
  %v1150 = vunpack.c.l.b16 %v907
  %v1151 = vunpack.c.h.b16 %v907
  %v1152 = vunpack.c.l.b16 %v908
  %v1153 = vunpack.c.l.b16 %v909
  %v1154 = vunpack.c.h.b16 %v909
  %v1155 = vunpack.c.l.b16 %v910
  %v1156 = vunpack.c.l.b16 %v911
  %v1157 = vunpack.c.h.b16 %v911
  %v1158 = vunpack.c.l.b16 %v912
  %v1159 = vunpack.c.l.b16 %v913
  %v1160 = vunpack.c.h.b16 %v913
  %v1161 = vunpack.c.l.b16 %v914
  %v1162 = vunpack.c.l.b16 %v915
  %v1163 = vunpack.c.h.b16 %v915
  %v1164 = vunpack.c.l.b16 %v916
  %v1165 = vunpack.c.l.b16 %v917
  %v1166 = vunpack.c.h.b16 %v917
  %v1167 = vunpack.c.l.b16 %v918
  %v1168 = vunpack.c.l.b16 %v919
  %v1169 = vunpack.c.h.b16 %v919
  %v1170 = vunpack.c.l.b16 %v920
  %v1171 = vunpack.c.l.b16 %v921
  %v1172 = vunpack.c.h.b16 %v921
  %v1173 = vunpack.c.l.b16 %v922
  %v1174 = vunpack.c.l.b16 %v923
  %v1175 = vunpack.c.h.b16 %v923
  %v1176 = vunpack.c.l.b16 %v924
  %v1177 = vunpack.c.l.b16 %v925
  %v1178 = vunpack.c.h.b16 %v925
  %v1179 = vunpack.c.l.b16 %v926
  %v1180 = vunpack.c.l.b16 %v927
  %v1181 = vunpack.c.h.b16 %v927
  %v1182 = vunpack.c.l.b16 %v928
  %v1183 = vunpack.c.l.b16 %v929
  %v1184 = vunpack.c.h.b16 %v929
  %v1185 = vunpack.c.l.b16 %v930
  %v1186 = vunpack.c.l.b16 %v931
  %v1187 = vunpack.c.h.b16 %v931
  %v1188 = vunpack.c.l.b16 %v932
  %v1189 = vunpack.c.l.b16 %v933
  %v1190 = vunpack.c.h.b16 %v933
  %v1191 = vunpack.c.l.b16 %v934
  %v1192 = vpack.c.b16 %v1051, %v1048
  %v1193 = vpack.c.b16 %v1052, %v1049
  %v1194 = vpack.c.b16 %v1053, %v1050
  %v1195 = vpack.c.b16 %v1057, %v1054
  %v1196 = vpack.c.b16 %v1058, %v1055
  %v1197 = vpack.c.b16 %v1059, %v1056
  %v1198 = vpack.c.b16 %v1063, %v1060
  %v1199 = vpack.c.b16 %v1064, %v1061
  %v1200 = vpack.c.b16 %v1065, %v1062
  %v1201 = vpack.c.b16 %v1069, %v1066
  %v1202 = vpack.c.b16 %v1070, %v1067
  %v1203 = vpack.c.b16 %v1071, %v1068
  %v1204 = vpack.c.b16 %v1075, %v1072
  %v1205 = vpack.c.b16 %v1076, %v1073
  %v1206 = vpack.c.b16 %v1077, %v1074
  %v1207 = vpack.c.b16 %v1081, %v1078
  %v1208 = vpack.c.b16 %v1082, %v1079
  %v1209 = vpack.c.b16 %v1083, %v1080
  %v1210 = vpack.c.b16 %v1087, %v1084
  %v1211 = vpack.c.b16 %v1088, %v1085
  %v1212 = vpack.c.b16 %v1089, %v1086
  %v1213 = vpack.c.b16 %v1093, %v1090
  %v1214 = vpack.c.b16 %v1094, %v1091
  %v1215 = vpack.c.b16 %v1095, %v1092
  %v1216 = vpack.c.b16 %v1099, %v1096
  %v1217 = vpack.c.b16 %v1100, %v1097
  %v1218 = vpack.c.b16 %v1101, %v1098
  %v1219 = vpack.c.b16 %v1105, %v1102
  %v1220 = vpack.c.b16 %v1106, %v1103
  %v1221 = vpack.c.b16 %v1107, %v1104
  %v1222 = vpack.c.b16 %v1111, %v1108
  %v1223 = vpack.c.b16 %v1112, %v1109
  %v1224 = vpack.c.b16 %v1113, %v1110
  %v1225 = vpack.c.b16 %v1117, %v1114
  %v1226 = vpack.c.b16 %v1118, %v1115
  %v1227 = vpack.c.b16 %v1119, %v1116
  %v1228 = vpack.c.b16 %v1123, %v1120
  %v1229 = vpack.c.b16 %v1124, %v1121
  %v1230 = vpack.c.b16 %v1125, %v1122
  %v1231 = vpack.c.b16 %v1129, %v1126
  %v1232 = vpack.c.b16 %v1130, %v1127
  %v1233 = vpack.c.b16 %v1131, %v1128
  %v1234 = vpack.c.b16 %v1135, %v1132
  %v1235 = vpack.c.b16 %v1136, %v1133
  %v1236 = vpack.c.b16 %v1137, %v1134
  %v1237 = vpack.c.b16 %v1141, %v1138
  %v1238 = vpack.c.b16 %v1142, %v1139
  %v1239 = vpack.c.b16 %v1143, %v1140
  %v1240 = vpack.c.b16 %v1147, %v1144
  %v1241 = vpack.c.b16 %v1148, %v1145
  %v1242 = vpack.c.b16 %v1149, %v1146
  %v1243 = vpack.c.b16 %v1153, %v1150
  %v1244 = vpack.c.b16 %v1154, %v1151
  %v1245 = vpack.c.b16 %v1155, %v1152
  %v1246 = vpack.c.b16 %v1159, %v1156
  %v1247 = vpack.c.b16 %v1160, %v1157
  %v1248 = vpack.c.b16 %v1161, %v1158
  %v1249 = vpack.c.b16 %v1165, %v1162
  %v1250 = vpack.c.b16 %v1166, %v1163
  %v1251 = vpack.c.b16 %v1167, %v1164
  %v1252 = vpack.c.b16 %v1171, %v1168
  %v1253 = vpack.c.b16 %v1172, %v1169
  %v1254 = vpack.c.b16 %v1173, %v1170
  %v1255 = vpack.c.b16 %v1177, %v1174
  %v1256 = vpack.c.b16 %v1178, %v1175
  %v1257 = vpack.c.b16 %v1179, %v1176
  %v1258 = vpack.c.b16 %v1183, %v1180
  %v1259 = vpack.c.b16 %v1184, %v1181
  %v1260 = vpack.c.b16 %v1185, %v1182
  %v1261 = vpack.c.b16 %v1189, %v1186
  %v1262 = vpack.c.b16 %v1190, %v1187
  %v1263 = vpack.c.b16 %v1191, %v1188
  %1336 = vmatprep.subr.bf16.mxu0 %v1193
  %1337 = vmatpush1.bf16.msra.mxu0 %v1192
  %1338 = vmatprep.subr.bf16.mxu0 %v1196
  %1339 = vmatpush1.bf16.msra.mxu0 %v1195
  %1340 = vmatprep.subr.bf16.mxu0 %v1199
  %1341 = vmatpush1.bf16.msra.mxu0 %v1198
  %1342 = vmatprep.subr.bf16.mxu0 %v1202
  %1343 = vmatpush1.bf16.msra.mxu0 %v1201
  %1344 = vmatprep.subr.bf16.mxu0 %v1205
  %1345 = vmatpush1.bf16.msra.mxu0 %v1204
  %1346 = vmatprep.subr.bf16.mxu0 %v1208
  %1347 = vmatpush1.bf16.msra.mxu0 %v1207
  %1348 = vmatprep.subr.bf16.mxu0 %v1211
  %1349 = vmatpush1.bf16.msra.mxu0 %v1210
  %1350 = vmatprep.subr.bf16.mxu0 %v1214
  %1351 = vmatpush1.bf16.msra.mxu0 %v1213
  %1352 = vmatprep.subr.bf16.mxu0 %v1217
  %1353 = vmatpush1.bf16.msra.mxu0 %v1216
  %1354 = vmatprep.subr.bf16.mxu0 %v1220
  %1355 = vmatpush1.bf16.msra.mxu0 %v1219
  %1356 = vmatprep.subr.bf16.mxu0 %v1223
  %1357 = vmatpush1.bf16.msra.mxu0 %v1222
  %1358 = vmatprep.subr.bf16.mxu0 %v1226
  %1359 = vmatpush1.bf16.msra.mxu0 %v1225
  %1360 = vmatprep.subr.bf16.mxu0 %v1229
  %1361 = vmatpush1.bf16.msra.mxu0 %v1228
  %1362 = vmatprep.subr.bf16.mxu0 %v1232
  %1363 = vmatpush1.bf16.msra.mxu0 %v1231
  %1364 = vmatprep.subr.bf16.mxu0 %v1235
  %1365 = vmatpush1.bf16.msra.mxu0 %v1234
  %1366 = vmatprep.subr.bf16.mxu0 %v1238
  %1367 = vmatpush1.bf16.msra.mxu0 %v1237
  %1368 = vmatprep.mubr.bf16.mxu0 %v837
  %1369 = vmatmul.mubr.bf16.gmra.mrb[0].mxu0 %v836
  %v1370 = vpop.f32.mrb[0].mxu0
  %v1371 = vadd.f32 %v940, %v1370
  %v1372 = vpop.f32.mrb[0].mxu0
  %v1373 = vadd.f32 %v944, %v1372
  %v1374 = vpop.f32.mrb[0].mxu0
  %v1375 = vadd.f32 %v940, %v1374
  %v1376 = vpop.f32.mrb[0].mxu0
  %v1377 = vadd.f32 %v944, %v1376
  %1378 = vdwg.mxu0
  %1379 = vmatprep.subr.bf16.mxu0 %v1241
  %1380 = vmatpush1.bf16.msra.mxu0 %v1240
  %1381 = vmatprep.subr.bf16.mxu0 %v1244
  %1382 = vmatpush1.bf16.msra.mxu0 %v1243
  %1383 = vmatprep.subr.bf16.mxu0 %v1247
  %1384 = vmatpush1.bf16.msra.mxu0 %v1246
  %1385 = vmatprep.subr.bf16.mxu0 %v1250
  %1386 = vmatpush1.bf16.msra.mxu0 %v1249
  %1387 = vmatprep.subr.bf16.mxu0 %v1253
  %1388 = vmatpush1.bf16.msra.mxu0 %v1252
  %1389 = vmatprep.subr.bf16.mxu0 %v1256
  %1390 = vmatpush1.bf16.msra.mxu0 %v1255
  %1391 = vmatprep.subr.bf16.mxu0 %v1259
  %1392 = vmatpush1.bf16.msra.mxu0 %v1258
  %1393 = vmatprep.subr.bf16.mxu0 %v1262
  %1394 = vmatpush1.bf16.msra.mxu0 %v1261
  %1395 = vmatprep.subr.bf16.mxu0 0
  %1396 = vmatpush1.bf16.msra.mxu0 0
  %1397 = vmatprep.subr.bf16.mxu0 0
  %1398 = vmatpush1.bf16.msra.mxu0 0
  %1399 = vmatprep.subr.bf16.mxu0 0
  %1400 = vmatpush1.bf16.msra.mxu0 0
  %1401 = vmatprep.subr.bf16.mxu0 0
  %1402 = vmatpush1.bf16.msra.mxu0 0
  %1403 = vmatprep.subr.bf16.mxu0 0
  %1404 = vmatpush1.bf16.msra.mxu0 0
  %1405 = vmatprep.subr.bf16.mxu0 0
  %1406 = vmatpush1.bf16.msra.mxu0 0
  %1407 = vmatprep.subr.bf16.mxu0 0
  %1408 = vmatpush1.bf16.msra.mxu0 0
  %1409 = vmatprep.subr.bf16.mxu0 0
  %1410 = vmatpush1.bf16.msra.mxu0 0
  %1411 = vmatprep.mubr.bf16.mxu0 0
  %1412 = vmatmul.mubr.bf16.gmra.mrb[0].mxu0 %v838
  %v1413 = vpop.f32.mrb[0].mxu0
  %v1414 = vadd.f32 %v1371, %v1413
  %v1415 = vpop.f32.mrb[0].mxu0
  %v1416 = vadd.f32 %v1373, %v1415
  %v1417 = vpop.f32.mrb[0].mxu0
  %v1418 = vadd.f32 %v1375, %v1417
  %v1419 = vpop.f32.mrb[0].mxu0
  %v1420 = vadd.f32 %v1377, %v1419
  %1421 = vdwg.mxu0
  %1422 = vmatprep.subr.bf16.mxu0 0
  %1423 = vmatpush1.bf16.msra.mxu0 %v1194
  %1424 = vmatprep.subr.bf16.mxu0 0
  %1425 = vmatpush1.bf16.msra.mxu0 %v1197
  %1426 = vmatprep.subr.bf16.mxu0 0
  %1427 = vmatpush1.bf16.msra.mxu0 %v1200
  %1428 = vmatprep.subr.bf16.mxu0 0
  %1429 = vmatpush1.bf16.msra.mxu0 %v1203
  %1430 = vmatprep.subr.bf16.mxu0 0
  %1431 = vmatpush1.bf16.msra.mxu0 %v1206
  %1432 = vmatprep.subr.bf16.mxu0 0
  %1433 = vmatpush1.bf16.msra.mxu0 %v1209
  %1434 = vmatprep.subr.bf16.mxu0 0
  %1435 = vmatpush1.bf16.msra.mxu0 %v1212
  %1436 = vmatprep.subr.bf16.mxu0 0
  %1437 = vmatpush1.bf16.msra.mxu0 %v1215
  %1438 = vmatprep.subr.bf16.mxu0 0
  %1439 = vmatpush1.bf16.msra.mxu0 %v1218
  %1440 = vmatprep.subr.bf16.mxu0 0
  %1441 = vmatpush1.bf16.msra.mxu0 %v1221
  %1442 = vmatprep.subr.bf16.mxu0 0
  %1443 = vmatpush1.bf16.msra.mxu0 %v1224
  %1444 = vmatprep.subr.bf16.mxu0 0
  %1445 = vmatpush1.bf16.msra.mxu0 %v1227
  %1446 = vmatprep.subr.bf16.mxu0 0
  %1447 = vmatpush1.bf16.msra.mxu0 %v1230
  %1448 = vmatprep.subr.bf16.mxu0 0
  %1449 = vmatpush1.bf16.msra.mxu0 %v1233
  %1450 = vmatprep.subr.bf16.mxu0 0
  %1451 = vmatpush1.bf16.msra.mxu0 %v1236
  %1452 = vmatprep.subr.bf16.mxu0 0
  %1453 = vmatpush1.bf16.msra.mxu0 %v1239
  %1454 = vmatprep.mubr.bf16.mxu0 %v837
  %1455 = vmatmul.mubr.bf16.gmra.mrb[0].mxu0 %v836
  %v1456 = vpop.f32.mrb[0].mxu0
  %v1457 = vadd.f32 %v948, %v1456
  %v1458 = vpop.f32.mrb[0].mxu0
  %v1459 = vpop.f32.mrb[0].mxu0
  %v1460 = vadd.f32 %v948, %v1459
  %v1461 = vpop.f32.mrb[0].mxu0
  %1462 = vdwg.mxu0
  %1463 = vmatprep.subr.bf16.mxu0 0
  %1464 = vmatpush1.bf16.msra.mxu0 %v1242
  %1465 = vmatprep.subr.bf16.mxu0 0
  %1466 = vmatpush1.bf16.msra.mxu0 %v1245
  %1467 = vmatprep.subr.bf16.mxu0 0
  %1468 = vmatpush1.bf16.msra.mxu0 %v1248
  %1469 = vmatprep.subr.bf16.mxu0 0
  %1470 = vmatpush1.bf16.msra.mxu0 %v1251
  %1471 = vmatprep.subr.bf16.mxu0 0
  %1472 = vmatpush1.bf16.msra.mxu0 %v1254
  %1473 = vmatprep.subr.bf16.mxu0 0
  %1474 = vmatpush1.bf16.msra.mxu0 %v1257
  %1475 = vmatprep.subr.bf16.mxu0 0
  %1476 = vmatpush1.bf16.msra.mxu0 %v1260
  %1477 = vmatprep.subr.bf16.mxu0 0
  %1478 = vmatpush1.bf16.msra.mxu0 %v1263
  %1479 = vmatprep.subr.bf16.mxu0 0
  %1480 = vmatpush1.bf16.msra.mxu0 0
  %1481 = vmatprep.subr.bf16.mxu0 0
  %1482 = vmatpush1.bf16.msra.mxu0 0
  %1483 = vmatprep.subr.bf16.mxu0 0
  %1484 = vmatpush1.bf16.msra.mxu0 0
  %1485 = vmatprep.subr.bf16.mxu0 0
  %1486 = vmatpush1.bf16.msra.mxu0 0
  %1487 = vmatprep.subr.bf16.mxu0 0
  %1488 = vmatpush1.bf16.msra.mxu0 0
  %1489 = vmatprep.subr.bf16.mxu0 0
  %1490 = vmatpush1.bf16.msra.mxu0 0
  %1491 = vmatprep.subr.bf16.mxu0 0
  %1492 = vmatpush1.bf16.msra.mxu0 0
  %1493 = vmatprep.subr.bf16.mxu0 0
  %1494 = vmatpush1.bf16.msra.mxu0 0
  %1495 = vmatprep.mubr.bf16.mxu0 0
  %1496 = vmatmul.mubr.bf16.gmra.mrb[0].mxu0 %v838
  %v1497 = vpop.f32.mrb[0].mxu0
  %v1498 = vadd.f32 %v1457, %v1497
  %v1499 = vpop.f32.mrb[0].mxu0
  %v1500 = vpop.f32.mrb[0].mxu0
  %v1501 = vadd.f32 %v1460, %v1500
  %v1502 = vpop.f32.mrb[0].mxu0
  %1503 = vdwg.mxu0
  %v1504 = vmax.f32 %v1414, 0.0
  %v1505 = vmax.f32 %v1416, 0.0
  %v1506 = vmax.f32 %v1498, 0.0
  %v1507 = vmax.f32 %v1418, 0.0
  %v1508 = vmax.f32 %v1420, 0.0
  %v1509 = vmax.f32 %v1501, 0.0
  %v1510 = vpack.c.bf16 %v1507, %v1504
  %v1511 = vpack.c.bf16 %v1508, %v1505
  %v1512 = vpack.c.bf16 %v1509, %v1506
  %1513 = vst [vmem:[#allocation5] sm:$0xff] %v1510
  %1514 = vst [vmem:[#allocation5 + $0x8] sm:$0xff] %v1511
  %1515 = vst.msk [vmem:[#allocation5 + $0x10] sm:$0xff] %vm362, %v1512
  %v1516 = vrot.slane %v1504, 1
  %v1517 = vrot.slane %v1505, 1
  %v1518 = vrot.slane %v1506, 1
  %v1519 = vrot.slane %v1507, 1
  %v1520 = vrot.slane %v1508, 1
  %v1521 = vrot.slane %v1509, 1
  %v1522 = vsel %vm57, %v1516, %v1519
  %v1523 = vsel %vm57, %v1517, %v1520
  %v1524 = vsel %vm57, %v1518, %v1521
  %v1525 = vsel %vm57, %v1519, %v1516
  %v1526 = vsel %vm57, %v1520, %v1517
  %v1527 = vsel %vm57, %v1521, %v1518
  %v1528 = vpack.c.bf16 %v1525, %v1522
  %v1529 = vpack.c.bf16 %v1526, %v1523
  %v1530 = vpack.c.bf16 %v1527, %v1524
  %1534 = vrot.lane.b32.xlu0 %v1528, 64
  %v1535 = vpop.permute.xlu0 %1534
  %1536 = vrot.lane.b32.xlu0 %v1529, 64
  %v1537 = vpop.permute.xlu0 %1536
  %1538 = vrot.lane.b32.xlu0 %v1530, 64
  %v1539 = vpop.permute.xlu0 %1538
  %v1540 = vsel %vm829, %v1535, %v1537
  %v1541 = vsel %vm829, %v1537, %v1539
  %1545 = vst.msk [vmem:[#allocation5 + $0x10] sm:$0xff] %vm833, %v1535
  %1546 = vst [vmem:[#allocation5 + $0x18] sm:$0xff] %v1540
  %1547 = vst [vmem:[#allocation5 + $0x20] sm:$0xff] %v1541
  %v1548 = vrot.slane %v1504, 2
  %v1549 = vrot.slane %v1505, 2
  %v1550 = vrot.slane %v1506, 2
  %v1551 = vrot.slane %v1507, 2
  %v1552 = vrot.slane %v1508, 2
  %v1553 = vrot.slane %v1509, 2
  %vm1554 = vcmp.lt.s32.totalorder %v56, 6
  %v1555 = vsel %vm1554, %v1548, %v1551
  %v1556 = vsel %vm1554, %v1549, %v1552
  %v1557 = vsel %vm1554, %v1550, %v1553
  %v1558 = vsel %vm1554, %v1551, %v1548
  %v1559 = vsel %vm1554, %v1552, %v1549
  %v1560 = vsel %vm1554, %v1553, %v1550
  %v1561 = vpack.c.bf16 %v1558, %v1555
  %v1562 = vpack.c.bf16 %v1559, %v1556
  %v1563 = vpack.c.bf16 %v1560, %v1557
  %1564 = vst [vmem:[#allocation5 + $0x28] sm:$0xff] %v1561
  %1565 = vst [vmem:[#allocation5 + $0x30] sm:$0xff] %v1562
  %1566 = vst.msk [vmem:[#allocation5 + $0x38] sm:$0xff] %vm362, %v1563
  %v1567 = vrot.slane %v1504, 3
  %v1568 = vrot.slane %v1505, 3
  %v1569 = vrot.slane %v1506, 3
  %v1570 = vrot.slane %v1507, 3
  %v1571 = vrot.slane %v1508, 3
  %v1572 = vrot.slane %v1509, 3
  %vm1573 = vcmp.lt.s32.totalorder %v56, 5
  %v1574 = vsel %vm1573, %v1567, %v1570
  %v1575 = vsel %vm1573, %v1568, %v1571
  %v1576 = vsel %vm1573, %v1569, %v1572
  %v1577 = vsel %vm1573, %v1570, %v1567
  %v1578 = vsel %vm1573, %v1571, %v1568
  %v1579 = vsel %vm1573, %v1572, %v1569
  %v1580 = vpack.c.bf16 %v1577, %v1574
  %v1581 = vpack.c.bf16 %v1578, %v1575
  %v1582 = vpack.c.bf16 %v1579, %v1576
  %1586 = vrot.lane.b32.xlu0 %v1580, 64
  %v1587 = vpop.permute.xlu0 %1586
  %1588 = vrot.lane.b32.xlu0 %v1581, 64
  %v1589 = vpop.permute.xlu0 %1588
  %1590 = vrot.lane.b32.xlu0 %v1582, 64
  %v1591 = vpop.permute.xlu0 %1590
  %v1592 = vsel %vm829, %v1587, %v1589
  %v1593 = vsel %vm829, %v1589, %v1591
  %1597 = vst.msk [vmem:[#allocation5 + $0x38] sm:$0xff] %vm833, %v1587
  %1598 = vst [vmem:[#allocation5 + $0x40] sm:$0xff] %v1592
  %1599 = vst [vmem:[#allocation5 + $0x48] sm:$0xff] %v1593
  %v1600 = vrot.slane %v1504, 4
  %v1601 = vrot.slane %v1505, 4
  %v1602 = vrot.slane %v1506, 4
  %v1603 = vrot.slane %v1507, 4
  %v1604 = vrot.slane %v1508, 4
  %v1605 = vrot.slane %v1509, 4
  %vm1606 = vcmp.lt.s32.totalorder %v56, 4
  %v1607 = vsel %vm1606, %v1600, %v1603
  %v1608 = vsel %vm1606, %v1601, %v1604
  %v1609 = vsel %vm1606, %v1602, %v1605
  %v1610 = vsel %vm1606, %v1603, %v1600
  %v1611 = vsel %vm1606, %v1604, %v1601
  %v1612 = vsel %vm1606, %v1605, %v1602
  %v1613 = vpack.c.bf16 %v1610, %v1607
  %v1614 = vpack.c.bf16 %v1611, %v1608
  %v1615 = vpack.c.bf16 %v1612, %v1609
  %1616 = vst [vmem:[#allocation5 + $0x50] sm:$0xff] %v1613
  %1617 = vst [vmem:[#allocation5 + $0x58] sm:$0xff] %v1614
  %1618 = vst.msk [vmem:[#allocation5 + $0x60] sm:$0xff] %vm362, %v1615
  %v1619 = vld [vmem:[#allocation5] sm:$0xff]
  %v1620 = vld [vmem:[#allocation5 + $0x8] sm:$0xff]
  %v1621 = vld [vmem:[#allocation5 + $0x10] sm:$0xff]
  %v1622 = vld [vmem:[#allocation5 + $0x18] sm:$0xff]
  %v1623 = vld [vmem:[#allocation5 + $0x20] sm:$0xff]
  %v1624 = vld [vmem:[#allocation5 + $0x28] sm:$0xff]
  %v1625 = vld [vmem:[#allocation5 + $0x30] sm:$0xff]
  %v1626 = vld [vmem:[#allocation5 + $0x38] sm:$0xff]
  %v1627 = vld [vmem:[#allocation5 + $0x40] sm:$0xff]
  %v1628 = vld [vmem:[#allocation5 + $0x48] sm:$0xff]
  %v1629 = vld [vmem:[#allocation5 + $0x50] sm:$0xff]
  %v1630 = vld [vmem:[#allocation5 + $0x58] sm:$0xff]
  %v1631 = vld [vmem:[#allocation5 + $0x60] sm:$0xff]
  %v1632 = vld [vmem:[%s8] sm:$0xf]
  %v1633 = vld [vmem:[%s8 + $0x4] sm:$0xf]
  %v1634 = vld [vmem:[%s8 + $0x8] sm:$0xf]
  %v1635 = vld [vmem:[%s8 + $0xc] sm:$0xf]
  %v1636 = vld [vmem:[%s8 + $0x10] sm:$0xf]
  %v1637 = vld [vmem:[%s8 + $0x14] sm:$0xf]
  %v1638 = vld [vmem:[%s8 + $0x18] sm:$0xf]
  %v1639 = vld [vmem:[%s8 + $0x1c] sm:$0xf]
  %v1640 = vld [vmem:[%s8 + $0x20] sm:$0xf]
  %v1641 = vld [vmem:[%s8 + $0x24] sm:$0xf]
  %v1642 = vld [vmem:[%s8 + $0x28] sm:$0xf]
  %v1643 = vld [vmem:[%s8 + $0x2c] sm:$0xf]
  %v1644 = vld [vmem:[%s8 + $0x30] sm:$0xf]
  %v1645 = vld [vmem:[%s8 + $0x34] sm:$0xf]
  %v1646 = vld [vmem:[%s8 + $0x38] sm:$0xf]
  %v1647 = vld [vmem:[%s8 + $0x3c] sm:$0xf]
  %v1648 = vld [vmem:[%s8 + $0x40] sm:$0xf]
  %v1649 = vld [vmem:[%s8 + $0x44] sm:$0xf]
  %v1650 = vld [vmem:[%s8 + $0x48] sm:$0xf]
  %v1651 = vld [vmem:[%s8 + $0x4c] sm:$0xf]
  %v1652 = vld [vmem:[%s8 + $0x50] sm:$0xf]
  %v1653 = vld [vmem:[%s8 + $0x54] sm:$0xf]
  %v1654 = vld [vmem:[%s8 + $0x58] sm:$0xf]
  %v1655 = vld [vmem:[%s8 + $0x5c] sm:$0xf]
  %v1656 = vld [vmem:[%s8 + $0x60] sm:$0xf]
  %v1657 = vld [vmem:[%s8 + $0x64] sm:$0xf]
  %v1658 = vld [vmem:[%s8 + $0x68] sm:$0xf]
  %v1659 = vld [vmem:[%s8 + $0x6c] sm:$0xf]
  %v1660 = vld [vmem:[%s8 + $0x70] sm:$0xf]
  %v1661 = vld [vmem:[%s8 + $0x74] sm:$0xf]
  %v1662 = vld [vmem:[%s8 + $0x78] sm:$0xf]
  %v1663 = vld [vmem:[%s8 + $0x7c] sm:$0xf]
  %v1664 = vld [vmem:[%s8 + $0x80] sm:$0xf]
  %v1665 = vld [vmem:[%s8 + $0x84] sm:$0xf]
  %v1666 = vld [vmem:[%s8 + $0x88] sm:$0xf]
  %v1667 = vld [vmem:[%s8 + $0x8c] sm:$0xf]
  %v1668 = vld [vmem:[%s8 + $0x90] sm:$0xf]
  %v1669 = vld [vmem:[%s8 + $0x94] sm:$0xf]
  %v1670 = vld [vmem:[%s8 + $0x98] sm:$0xf]
  %v1671 = vld [vmem:[%s8 + $0x9c] sm:$0xf]
  %v1672 = vld [vmem:[%s8 + $0xa0] sm:$0xf]
  %v1673 = vld [vmem:[%s8 + $0xa4] sm:$0xf]
  %v1674 = vld [vmem:[%s8 + $0xa8] sm:$0xf]
  %v1675 = vld [vmem:[%s8 + $0xac] sm:$0xf]
  %v1676 = vld [vmem:[%s8 + $0xb0] sm:$0xf]
  %v1677 = vld [vmem:[%s8 + $0xb4] sm:$0xf]
  %v1678 = vld [vmem:[%s8 + $0xb8] sm:$0xf]
  %v1679 = vld [vmem:[%s8 + $0xbc] sm:$0xf]
  %v1680 = vld [vmem:[%s8 + $0xc0] sm:$0xf]
  %v1681 = vld [vmem:[%s8 + $0xc4] sm:$0xf]
  %v1682 = vld [vmem:[%s8 + $0xc8] sm:$0xf]
  %v1683 = vld [vmem:[%s8 + $0xcc] sm:$0xf]
  %v1684 = vld [vmem:[%s8 + $0xd0] sm:$0xf]
  %v1685 = vld [vmem:[%s8 + $0xd4] sm:$0xf]
  %v1686 = vld [vmem:[%s8 + $0xd8] sm:$0xf]
  %v1687 = vld [vmem:[%s8 + $0xdc] sm:$0xf]
  %v1688 = vld [vmem:[%s8 + $0xe0] sm:$0xf]
  %v1689 = vld [vmem:[%s8 + $0xe4] sm:$0xf]
  %v1690 = vld [vmem:[%s8 + $0xe8] sm:$0xf]
  %v1691 = vld [vmem:[%s8 + $0xec] sm:$0xf]
  %v1692 = vld [vmem:[%s8 + $0xf0] sm:$0xf]
  %v1693 = vld [vmem:[%s8 + $0xf4] sm:$0xf]
  %v1694 = vld [vmem:[%s8 + $0xf8] sm:$0xf]
  %v1695 = vld [vmem:[%s8 + $0xfc] sm:$0xf]
  %v1696 = vld [vmem:[%s8 + $0x100] sm:$0xf]
  %v1697 = vld [vmem:[%s8 + $0x104] sm:$0xf]
  %v1698 = vld [vmem:[%s8 + $0x108] sm:$0xf]
  %v1699 = vld [vmem:[%s8 + $0x10c] sm:$0xf]
  %v1700 = vld [vmem:[%s8 + $0x110] sm:$0xf]
  %v1701 = vld [vmem:[%s8 + $0x114] sm:$0xf]
  %v1702 = vld [vmem:[%s8 + $0x118] sm:$0xf]
  %v1703 = vld [vmem:[%s8 + $0x11c] sm:$0xf]
  %v1704 = vld [vmem:[%s8 + $0x120] sm:$0xf]
  %v1705 = vld [vmem:[%s8 + $0x124] sm:$0xf]
  %v1706 = vld [vmem:[%s8 + $0x128] sm:$0xf]
  %v1707 = vld [vmem:[%s8 + $0x12c] sm:$0xf]
  %v1708 = vld [vmem:[%s8 + $0x130] sm:$0xf]
  %v1709 = vld [vmem:[%s8 + $0x134] sm:$0xf]
  %v1710 = vld [vmem:[%s8 + $0x138] sm:$0xf]
  %v1711 = vld [vmem:[%s8 + $0x13c] sm:$0xf]
  %v1712 = vld [vmem:[%s8 + $0x140] sm:$0xf]
  %v1713 = vld [vmem:[%s8 + $0x144] sm:$0xf]
  %v1714 = vld [vmem:[%s8 + $0x148] sm:$0xf]
  %v1715 = vld [vmem:[%s8 + $0x14c] sm:$0xf]
  %v1716 = vld [vmem:[%s8 + $0x150] sm:$0xf]
  %v1717 = vld [vmem:[%s8 + $0x154] sm:$0xf]
  %v1718 = vld [vmem:[%s8 + $0x158] sm:$0xf]
  %v1719 = vld [vmem:[%s8 + $0x15c] sm:$0xf]
  %v1720 = vld [vmem:[%s8 + $0x160] sm:$0xf]
  %v1721 = vld [vmem:[%s8 + $0x164] sm:$0xf]
  %v1722 = vld [vmem:[%s8 + $0x168] sm:$0xf]
  %v1723 = vld [vmem:[%s8 + $0x16c] sm:$0xf]
  %v1724 = vld [vmem:[%s8 + $0x170] sm:$0xf]
  %v1725 = vld [vmem:[%s8 + $0x174] sm:$0xf]
  %v1726 = vld [vmem:[%s8 + $0x178] sm:$0xf]
  %v1727 = vld [vmem:[%s8 + $0x17c] sm:$0xf]
  %v1728 = vld [vmem:[%s8 + $0x180] sm:$0xf]
  %v1729 = vld [vmem:[%s8 + $0x184] sm:$0xf]
  %v1730 = vld [vmem:[%s8 + $0x188] sm:$0xf]
  %v1731 = vld [vmem:[%s8 + $0x18c] sm:$0xf]
  %v1732 = vld [vmem:[%s8 + $0x190] sm:$0xf]
  %v1733 = vld [vmem:[%s8 + $0x194] sm:$0xf]
  %v1734 = vld [vmem:[%s8 + $0x198] sm:$0xf]
  %v1735 = vld [vmem:[%s8 + $0x19c] sm:$0xf]
  %v1736 = vld [vmem:[%s8 + $0x1a0] sm:$0xf]
  %v1737 = vld [vmem:[%s8 + $0x1a4] sm:$0xf]
  %v1738 = vld [vmem:[%s8 + $0x1a8] sm:$0xf]
  %v1739 = vld [vmem:[%s8 + $0x1ac] sm:$0xf]
  %v1740 = vld [vmem:[%s8 + $0x1b0] sm:$0xf]
  %v1741 = vld [vmem:[%s8 + $0x1b4] sm:$0xf]
  %v1742 = vld [vmem:[%s8 + $0x1b8] sm:$0xf]
  %v1743 = vld [vmem:[%s8 + $0x1bc] sm:$0xf]
  %v1744 = vld [vmem:[%s8 + $0x1c0] sm:$0xf]
  %v1745 = vld [vmem:[%s8 + $0x1c4] sm:$0xf]
  %v1746 = vld [vmem:[%s8 + $0x1c8] sm:$0xf]
  %v1747 = vld [vmem:[%s8 + $0x1cc] sm:$0xf]
  %v1748 = vld [vmem:[%s8 + $0x1d0] sm:$0xf]
  %v1749 = vld [vmem:[%s8 + $0x1d4] sm:$0xf]
  %v1750 = vld [vmem:[%s8 + $0x1d8] sm:$0xf]
  %v1751 = vld [vmem:[%s8 + $0x1dc] sm:$0xf]
  %v1752 = vld [vmem:[%s8 + $0x1e0] sm:$0xf]
  %v1753 = vld [vmem:[%s8 + $0x1e4] sm:$0xf]
  %v1754 = vld [vmem:[%s8 + $0x1e8] sm:$0xf]
  %v1755 = vld [vmem:[%s8 + $0x1ec] sm:$0xf]
  %v1756 = vld [vmem:[%s8 + $0x1f0] sm:$0xf]
  %v1757 = vld [vmem:[%s8 + $0x1f4] sm:$0xf]
  %v1758 = vld [vmem:[%s8 + $0x1f8] sm:$0xf]
  %v1759 = vld [vmem:[%s8 + $0x1fc] sm:$0xf]
  %v1760 = vld [vmem:[%s8 + $0x200] sm:$0xf]
  %v1761 = vld [vmem:[%s8 + $0x204] sm:$0xf]
  %v1762 = vld [vmem:[%s8 + $0x208] sm:$0xf]
  %v1763 = vld [vmem:[%s8 + $0x20c] sm:$0xf]
  %v1764 = vld [vmem:[%s8 + $0x210] sm:$0xf]
  %v1765 = vld [vmem:[%s8 + $0x214] sm:$0xf]
  %v1766 = vld [vmem:[%s8 + $0x218] sm:$0xf]
  %v1767 = vld [vmem:[%s8 + $0x21c] sm:$0xf]
  %v1768 = vld [vmem:[%s8 + $0x220] sm:$0xf]
  %v1769 = vld [vmem:[%s8 + $0x224] sm:$0xf]
  %v1770 = vld [vmem:[%s8 + $0x228] sm:$0xf]
  %v1771 = vld [vmem:[%s8 + $0x22c] sm:$0xf]
  %v1772 = vld [vmem:[%s8 + $0x230] sm:$0xf]
  %v1773 = vld [vmem:[%s8 + $0x234] sm:$0xf]
  %v1774 = vld [vmem:[%s8 + $0x238] sm:$0xf]
  %v1775 = vld [vmem:[%s8 + $0x23c] sm:$0xf]
  %v1776 = vld [vmem:[%s8 + $0x240] sm:$0xf]
  %v1777 = vld [vmem:[%s8 + $0x244] sm:$0xf]
  %v1778 = vld [vmem:[%s8 + $0x248] sm:$0xf]
  %v1779 = vld [vmem:[%s8 + $0x24c] sm:$0xf]
  %v1780 = vld [vmem:[%s8 + $0x250] sm:$0xf]
  %v1781 = vld [vmem:[%s8 + $0x254] sm:$0xf]
  %v1782 = vld [vmem:[%s8 + $0x258] sm:$0xf]
  %v1783 = vld [vmem:[%s8 + $0x25c] sm:$0xf]
  %v1784 = vld [vmem:[%s8 + $0x260] sm:$0xf]
  %v1785 = vld [vmem:[%s8 + $0x264] sm:$0xf]
  %v1786 = vld [vmem:[%s8 + $0x268] sm:$0xf]
  %v1787 = vld [vmem:[%s8 + $0x26c] sm:$0xf]
  %v1788 = vld [vmem:[%s8 + $0x270] sm:$0xf]
  %v1789 = vld [vmem:[%s8 + $0x274] sm:$0xf]
  %v1790 = vld [vmem:[%s8 + $0x278] sm:$0xf]
  %v1791 = vld [vmem:[%s8 + $0x27c] sm:$0xf]
  %v1792 = vld [vmem:[%s8 + $0x280] sm:$0xf]
  %v1793 = vld [vmem:[%s8 + $0x284] sm:$0xf]
  %v1794 = vld [vmem:[%s8 + $0x288] sm:$0xf]
  %v1795 = vld [vmem:[%s8 + $0x28c] sm:$0xf]
  %v1796 = vld [vmem:[%s8 + $0x290] sm:$0xf]
  %v1797 = vld [vmem:[%s8 + $0x294] sm:$0xf]
  %v1798 = vld [vmem:[%s8 + $0x298] sm:$0xf]
  %v1799 = vld [vmem:[%s8 + $0x29c] sm:$0xf]
  %v1800 = vld [vmem:[%s8 + $0x2a0] sm:$0xf]
  %v1801 = vld [vmem:[%s8 + $0x2a4] sm:$0xf]
  %v1802 = vld [vmem:[%s8 + $0x2a8] sm:$0xf]
  %v1803 = vld [vmem:[%s8 + $0x2ac] sm:$0xf]
  %v1804 = vld [vmem:[%s8 + $0x2b0] sm:$0xf]
  %v1805 = vld [vmem:[%s8 + $0x2b4] sm:$0xf]
  %v1806 = vld [vmem:[%s8 + $0x2b8] sm:$0xf]
  %v1807 = vld [vmem:[%s8 + $0x2bc] sm:$0xf]
  %v1808 = vld [vmem:[%s8 + $0x2c0] sm:$0xf]
  %v1809 = vld [vmem:[%s8 + $0x2c4] sm:$0xf]
  %v1810 = vld [vmem:[%s8 + $0x2c8] sm:$0xf]
  %v1811 = vld [vmem:[%s8 + $0x2cc] sm:$0xf]
  %v1812 = vld [vmem:[%s8 + $0x2d0] sm:$0xf]
  %v1813 = vld [vmem:[%s8 + $0x2d4] sm:$0xf]
  %v1814 = vld [vmem:[%s8 + $0x2d8] sm:$0xf]
  %v1815 = vld [vmem:[%s8 + $0x2dc] sm:$0xf]
  %v1816 = vld [vmem:[%s8 + $0x2e0] sm:$0xf]
  %v1817 = vld [vmem:[%s8 + $0x2e4] sm:$0xf]
  %v1818 = vld [vmem:[%s8 + $0x2e8] sm:$0xf]
  %v1819 = vld [vmem:[%s8 + $0x2ec] sm:$0xf]
  %v1820 = vld [vmem:[%s8 + $0x2f0] sm:$0xf]
  %v1821 = vld [vmem:[%s8 + $0x2f4] sm:$0xf]
  %v1822 = vld [vmem:[%s8 + $0x2f8] sm:$0xf]
  %v1823 = vld [vmem:[%s8 + $0x2fc] sm:$0xf]
  %v1824 = vld [vmem:[%s8 + $0x300] sm:$0xf]
  %v1825 = vld [vmem:[%s8 + $0x304] sm:$0xf]
  %v1826 = vld [vmem:[%s8 + $0x308] sm:$0xf]
  %v1827 = vld [vmem:[%s8 + $0x30c] sm:$0xf]
  %v1828 = vld [vmem:[%s8 + $0x310] sm:$0xf]
  %v1829 = vld [vmem:[%s8 + $0x314] sm:$0xf]
  %v1830 = vld [vmem:[%s8 + $0x318] sm:$0xf]
  %v1831 = vld [vmem:[%s8 + $0x31c] sm:$0xf]
  %v1832 = vld [vmem:[%s9] sm:$0x1]
  %v1834 = vlaneseq
  %v1835 = vshrl.u32 %v1834, 7
  %v1836 = vsub.s32 0, %v1835
  %v1837 = vrot.slane %v1832, %v1836
  %v2039 = vunpack.c.l.b16 %v1632
  %v2040 = vunpack.c.l.b16 %v1633
  %v2041 = vunpack.c.l.b16 %v1634
  %v2042 = vunpack.c.l.b16 %v1635
  %v2043 = vunpack.c.l.b16 %v1636
  %v2044 = vunpack.c.l.b16 %v1637
  %v2045 = vunpack.c.l.b16 %v1638
  %v2046 = vunpack.c.l.b16 %v1639
  %v2047 = vunpack.c.l.b16 %v1640
  %v2048 = vunpack.c.l.b16 %v1641
  %v2049 = vunpack.c.l.b16 %v1642
  %v2050 = vunpack.c.l.b16 %v1643
  %v2051 = vunpack.c.l.b16 %v1644
  %v2052 = vunpack.c.l.b16 %v1645
  %v2053 = vunpack.c.l.b16 %v1646
  %v2054 = vunpack.c.l.b16 %v1647
  %v2055 = vunpack.c.l.b16 %v1648
  %v2056 = vunpack.c.l.b16 %v1649
  %v2057 = vunpack.c.l.b16 %v1650
  %v2058 = vunpack.c.l.b16 %v1651
  %v2059 = vunpack.c.l.b16 %v1652
  %v2060 = vunpack.c.l.b16 %v1653
  %v2061 = vunpack.c.l.b16 %v1654
  %v2062 = vunpack.c.l.b16 %v1655
  %v2063 = vunpack.c.l.b16 %v1656
  %v2064 = vunpack.c.l.b16 %v1657
  %v2065 = vunpack.c.l.b16 %v1658
  %v2066 = vunpack.c.l.b16 %v1659
  %v2067 = vunpack.c.l.b16 %v1660
  %v2068 = vunpack.c.l.b16 %v1661
  %v2069 = vunpack.c.l.b16 %v1662
  %v2070 = vunpack.c.l.b16 %v1663
  %v2071 = vunpack.c.l.b16 %v1664
  %v2072 = vunpack.c.l.b16 %v1665
  %v2073 = vunpack.c.l.b16 %v1666
  %v2074 = vunpack.c.l.b16 %v1667
  %v2075 = vunpack.c.l.b16 %v1668
  %v2076 = vunpack.c.l.b16 %v1669
  %v2077 = vunpack.c.l.b16 %v1670
  %v2078 = vunpack.c.l.b16 %v1671
  %v2079 = vunpack.c.l.b16 %v1672
  %v2080 = vunpack.c.l.b16 %v1673
  %v2081 = vunpack.c.l.b16 %v1674
  %v2082 = vunpack.c.l.b16 %v1675
  %v2083 = vunpack.c.l.b16 %v1676
  %v2084 = vunpack.c.l.b16 %v1677
  %v2085 = vunpack.c.l.b16 %v1678
  %v2086 = vunpack.c.l.b16 %v1679
  %v2087 = vunpack.c.l.b16 %v1680
  %v2088 = vunpack.c.l.b16 %v1681
  %v2089 = vunpack.c.l.b16 %v1682
  %v2090 = vunpack.c.l.b16 %v1683
  %v2091 = vunpack.c.l.b16 %v1684
  %v2092 = vunpack.c.l.b16 %v1685
  %v2093 = vunpack.c.l.b16 %v1686
  %v2094 = vunpack.c.l.b16 %v1687
  %v2095 = vunpack.c.l.b16 %v1688
  %v2096 = vunpack.c.l.b16 %v1689
  %v2097 = vunpack.c.l.b16 %v1690
  %v2098 = vunpack.c.l.b16 %v1691
  %v2099 = vunpack.c.l.b16 %v1692
  %v2100 = vunpack.c.l.b16 %v1693
  %v2101 = vunpack.c.l.b16 %v1694
  %v2102 = vunpack.c.l.b16 %v1695
  %v2103 = vunpack.c.l.b16 %v1696
  %v2104 = vunpack.c.l.b16 %v1697
  %v2105 = vunpack.c.l.b16 %v1698
  %v2106 = vunpack.c.l.b16 %v1699
  %v2107 = vunpack.c.l.b16 %v1700
  %v2108 = vunpack.c.l.b16 %v1701
  %v2109 = vunpack.c.l.b16 %v1702
  %v2110 = vunpack.c.l.b16 %v1703
  %v2111 = vunpack.c.l.b16 %v1704
  %v2112 = vunpack.c.l.b16 %v1705
  %v2113 = vunpack.c.l.b16 %v1706
  %v2114 = vunpack.c.l.b16 %v1707
  %v2115 = vunpack.c.l.b16 %v1708
  %v2116 = vunpack.c.l.b16 %v1709
  %v2117 = vunpack.c.l.b16 %v1710
  %v2118 = vunpack.c.l.b16 %v1711
  %v2119 = vunpack.c.l.b16 %v1712
  %v2120 = vunpack.c.l.b16 %v1713
  %v2121 = vunpack.c.l.b16 %v1714
  %v2122 = vunpack.c.l.b16 %v1715
  %v2123 = vunpack.c.l.b16 %v1716
  %v2124 = vunpack.c.l.b16 %v1717
  %v2125 = vunpack.c.l.b16 %v1718
  %v2126 = vunpack.c.l.b16 %v1719
  %v2127 = vunpack.c.l.b16 %v1720
  %v2128 = vunpack.c.l.b16 %v1721
  %v2129 = vunpack.c.l.b16 %v1722
  %v2130 = vunpack.c.l.b16 %v1723
  %v2131 = vunpack.c.l.b16 %v1724
  %v2132 = vunpack.c.l.b16 %v1725
  %v2133 = vunpack.c.l.b16 %v1726
  %v2134 = vunpack.c.l.b16 %v1727
  %v2135 = vunpack.c.l.b16 %v1728
  %v2136 = vunpack.c.l.b16 %v1729
  %v2137 = vunpack.c.l.b16 %v1730
  %v2138 = vunpack.c.l.b16 %v1731
  %v2139 = vunpack.c.l.b16 %v1732
  %v2140 = vunpack.c.l.b16 %v1733
  %v2141 = vunpack.c.l.b16 %v1734
  %v2142 = vunpack.c.l.b16 %v1735
  %v2143 = vunpack.c.l.b16 %v1736
  %v2144 = vunpack.c.l.b16 %v1737
  %v2145 = vunpack.c.l.b16 %v1738
  %v2146 = vunpack.c.l.b16 %v1739
  %v2147 = vunpack.c.l.b16 %v1740
  %v2148 = vunpack.c.l.b16 %v1741
  %v2149 = vunpack.c.l.b16 %v1742
  %v2150 = vunpack.c.l.b16 %v1743
  %v2151 = vunpack.c.l.b16 %v1744
  %v2152 = vunpack.c.l.b16 %v1745
  %v2153 = vunpack.c.l.b16 %v1746
  %v2154 = vunpack.c.l.b16 %v1747
  %v2155 = vunpack.c.l.b16 %v1748
  %v2156 = vunpack.c.l.b16 %v1749
  %v2157 = vunpack.c.l.b16 %v1750
  %v2158 = vunpack.c.l.b16 %v1751
  %v2159 = vunpack.c.l.b16 %v1752
  %v2160 = vunpack.c.l.b16 %v1753
  %v2161 = vunpack.c.l.b16 %v1754
  %v2162 = vunpack.c.l.b16 %v1755
  %v2163 = vunpack.c.l.b16 %v1756
  %v2164 = vunpack.c.l.b16 %v1757
  %v2165 = vunpack.c.l.b16 %v1758
  %v2166 = vunpack.c.l.b16 %v1759
  %v2167 = vunpack.c.l.b16 %v1760
  %v2168 = vunpack.c.l.b16 %v1761
  %v2169 = vunpack.c.l.b16 %v1762
  %v2170 = vunpack.c.l.b16 %v1763
  %v2171 = vunpack.c.l.b16 %v1764
  %v2172 = vunpack.c.l.b16 %v1765
  %v2173 = vunpack.c.l.b16 %v1766
  %v2174 = vunpack.c.l.b16 %v1767
  %v2175 = vunpack.c.l.b16 %v1768
  %v2176 = vunpack.c.l.b16 %v1769
  %v2177 = vunpack.c.l.b16 %v1770
  %v2178 = vunpack.c.l.b16 %v1771
  %v2179 = vunpack.c.l.b16 %v1772
  %v2180 = vunpack.c.l.b16 %v1773
  %v2181 = vunpack.c.l.b16 %v1774
  %v2182 = vunpack.c.l.b16 %v1775
  %v2183 = vunpack.c.l.b16 %v1776
  %v2184 = vunpack.c.l.b16 %v1777
  %v2185 = vunpack.c.l.b16 %v1778
  %v2186 = vunpack.c.l.b16 %v1779
  %v2187 = vunpack.c.l.b16 %v1780
  %v2188 = vunpack.c.l.b16 %v1781
  %v2189 = vunpack.c.l.b16 %v1782
  %v2190 = vunpack.c.l.b16 %v1783
  %v2191 = vunpack.c.l.b16 %v1784
  %v2192 = vunpack.c.l.b16 %v1785
  %v2193 = vunpack.c.l.b16 %v1786
  %v2194 = vunpack.c.l.b16 %v1787
  %v2195 = vunpack.c.l.b16 %v1788
  %v2196 = vunpack.c.l.b16 %v1789
  %v2197 = vunpack.c.l.b16 %v1790
  %v2198 = vunpack.c.l.b16 %v1791
  %v2199 = vunpack.c.l.b16 %v1792
  %v2200 = vunpack.c.l.b16 %v1793
  %v2201 = vunpack.c.l.b16 %v1794
  %v2202 = vunpack.c.l.b16 %v1795
  %v2203 = vunpack.c.l.b16 %v1796
  %v2204 = vunpack.c.l.b16 %v1797
  %v2205 = vunpack.c.l.b16 %v1798
  %v2206 = vunpack.c.l.b16 %v1799
  %v2207 = vunpack.c.l.b16 %v1800
  %v2208 = vunpack.c.l.b16 %v1801
  %v2209 = vunpack.c.l.b16 %v1802
  %v2210 = vunpack.c.l.b16 %v1803
  %v2211 = vunpack.c.l.b16 %v1804
  %v2212 = vunpack.c.l.b16 %v1805
  %v2213 = vunpack.c.l.b16 %v1806
  %v2214 = vunpack.c.l.b16 %v1807
  %v2215 = vunpack.c.l.b16 %v1808
  %v2216 = vunpack.c.l.b16 %v1809
  %v2217 = vunpack.c.l.b16 %v1810
  %v2218 = vunpack.c.l.b16 %v1811
  %v2219 = vunpack.c.l.b16 %v1812
  %v2220 = vunpack.c.l.b16 %v1813
  %v2221 = vunpack.c.l.b16 %v1814
  %v2222 = vunpack.c.l.b16 %v1815
  %v2223 = vunpack.c.l.b16 %v1816
  %v2224 = vunpack.c.l.b16 %v1817
  %v2225 = vunpack.c.l.b16 %v1818
  %v2226 = vunpack.c.l.b16 %v1819
  %v2227 = vunpack.c.l.b16 %v1820
  %v2228 = vunpack.c.l.b16 %v1821
  %v2229 = vunpack.c.l.b16 %v1822
  %v2230 = vunpack.c.l.b16 %v1823
  %v2231 = vunpack.c.l.b16 %v1824
  %v2232 = vunpack.c.l.b16 %v1825
  %v2233 = vunpack.c.l.b16 %v1826
  %v2234 = vunpack.c.l.b16 %v1827
  %v2235 = vunpack.c.l.b16 %v1828
  %v2236 = vunpack.c.l.b16 %v1829
  %v2237 = vunpack.c.l.b16 %v1830
  %v2238 = vunpack.c.l.b16 %v1831
  %v2239 = vpack.c.b16 %v2040, %v2039
  %v2240 = vpack.c.b16 %v2042, %v2041
  %v2241 = vpack.c.b16 %v2044, %v2043
  %v2242 = vpack.c.b16 %v2046, %v2045
  %v2243 = vpack.c.b16 %v2048, %v2047
  %v2244 = vpack.c.b16 %v2050, %v2049
  %v2245 = vpack.c.b16 %v2052, %v2051
  %v2246 = vpack.c.b16 %v2054, %v2053
  %v2247 = vpack.c.b16 %v2056, %v2055
  %v2248 = vpack.c.b16 %v2058, %v2057
  %v2249 = vpack.c.b16 %v2060, %v2059
  %v2250 = vpack.c.b16 %v2062, %v2061
  %v2251 = vpack.c.b16 %v2064, %v2063
  %v2252 = vpack.c.b16 %v2066, %v2065
  %v2253 = vpack.c.b16 %v2068, %v2067
  %v2254 = vpack.c.b16 %v2070, %v2069
  %v2255 = vpack.c.b16 %v2072, %v2071
  %v2256 = vpack.c.b16 %v2074, %v2073
  %v2257 = vpack.c.b16 %v2076, %v2075
  %v2258 = vpack.c.b16 %v2078, %v2077
  %v2259 = vpack.c.b16 %v2080, %v2079
  %v2260 = vpack.c.b16 %v2082, %v2081
  %v2261 = vpack.c.b16 %v2084, %v2083
  %v2262 = vpack.c.b16 %v2086, %v2085
  %v2263 = vpack.c.b16 %v2088, %v2087
  %v2264 = vpack.c.b16 %v2090, %v2089
  %v2265 = vpack.c.b16 %v2092, %v2091
  %v2266 = vpack.c.b16 %v2094, %v2093
  %v2267 = vpack.c.b16 %v2096, %v2095
  %v2268 = vpack.c.b16 %v2098, %v2097
  %v2269 = vpack.c.b16 %v2100, %v2099
  %v2270 = vpack.c.b16 %v2102, %v2101
  %v2271 = vpack.c.b16 %v2104, %v2103
  %v2272 = vpack.c.b16 %v2106, %v2105
  %v2273 = vpack.c.b16 %v2108, %v2107
  %v2274 = vpack.c.b16 %v2110, %v2109
  %v2275 = vpack.c.b16 %v2112, %v2111
  %v2276 = vpack.c.b16 %v2114, %v2113
  %v2277 = vpack.c.b16 %v2116, %v2115
  %v2278 = vpack.c.b16 %v2118, %v2117
  %v2279 = vpack.c.b16 %v2120, %v2119
  %v2280 = vpack.c.b16 %v2122, %v2121
  %v2281 = vpack.c.b16 %v2124, %v2123
  %v2282 = vpack.c.b16 %v2126, %v2125
  %v2283 = vpack.c.b16 %v2128, %v2127
  %v2284 = vpack.c.b16 %v2130, %v2129
  %v2285 = vpack.c.b16 %v2132, %v2131
  %v2286 = vpack.c.b16 %v2134, %v2133
  %v2287 = vpack.c.b16 %v2136, %v2135
  %v2288 = vpack.c.b16 %v2138, %v2137
  %v2289 = vpack.c.b16 %v2140, %v2139
  %v2290 = vpack.c.b16 %v2142, %v2141
  %v2291 = vpack.c.b16 %v2144, %v2143
  %v2292 = vpack.c.b16 %v2146, %v2145
  %v2293 = vpack.c.b16 %v2148, %v2147
  %v2294 = vpack.c.b16 %v2150, %v2149
  %v2295 = vpack.c.b16 %v2152, %v2151
  %v2296 = vpack.c.b16 %v2154, %v2153
  %v2297 = vpack.c.b16 %v2156, %v2155
  %v2298 = vpack.c.b16 %v2158, %v2157
  %v2299 = vpack.c.b16 %v2160, %v2159
  %v2300 = vpack.c.b16 %v2162, %v2161
  %v2301 = vpack.c.b16 %v2164, %v2163
  %v2302 = vpack.c.b16 %v2166, %v2165
  %v2303 = vpack.c.b16 %v2168, %v2167
  %v2304 = vpack.c.b16 %v2170, %v2169
  %v2305 = vpack.c.b16 %v2172, %v2171
  %v2306 = vpack.c.b16 %v2174, %v2173
  %v2307 = vpack.c.b16 %v2176, %v2175
  %v2308 = vpack.c.b16 %v2178, %v2177
  %v2309 = vpack.c.b16 %v2180, %v2179
  %v2310 = vpack.c.b16 %v2182, %v2181
  %v2311 = vpack.c.b16 %v2184, %v2183
  %v2312 = vpack.c.b16 %v2186, %v2185
  %v2313 = vpack.c.b16 %v2188, %v2187
  %v2314 = vpack.c.b16 %v2190, %v2189
  %v2315 = vpack.c.b16 %v2192, %v2191
  %v2316 = vpack.c.b16 %v2194, %v2193
  %v2317 = vpack.c.b16 %v2196, %v2195
  %v2318 = vpack.c.b16 %v2198, %v2197
  %v2319 = vpack.c.b16 %v2200, %v2199
  %v2320 = vpack.c.b16 %v2202, %v2201
  %v2321 = vpack.c.b16 %v2204, %v2203
  %v2322 = vpack.c.b16 %v2206, %v2205
  %v2323 = vpack.c.b16 %v2208, %v2207
  %v2324 = vpack.c.b16 %v2210, %v2209
  %v2325 = vpack.c.b16 %v2212, %v2211
  %v2326 = vpack.c.b16 %v2214, %v2213
  %v2327 = vpack.c.b16 %v2216, %v2215
  %v2328 = vpack.c.b16 %v2218, %v2217
  %v2329 = vpack.c.b16 %v2220, %v2219
  %v2330 = vpack.c.b16 %v2222, %v2221
  %v2331 = vpack.c.b16 %v2224, %v2223
  %v2332 = vpack.c.b16 %v2226, %v2225
  %v2333 = vpack.c.b16 %v2228, %v2227
  %v2334 = vpack.c.b16 %v2230, %v2229
  %v2335 = vpack.c.b16 %v2232, %v2231
  %v2336 = vpack.c.b16 %v2234, %v2233
  %v2337 = vpack.c.b16 %v2236, %v2235
  %v2338 = vpack.c.b16 %v2238, %v2237
  %v2440 = vsel %vm362, %v1631, 0
  %2442 = vmatprep.subr.bf16.mxu0 0
  %2443 = vmatpush1.bf16.msra.mxu0 %v2239
  %2444 = vmatprep.subr.bf16.mxu0 0
  %2445 = vmatpush1.bf16.msra.mxu0 %v2240
  %2446 = vmatprep.subr.bf16.mxu0 0
  %2447 = vmatpush1.bf16.msra.mxu0 %v2241
  %2448 = vmatprep.subr.bf16.mxu0 0
  %2449 = vmatpush1.bf16.msra.mxu0 %v2242
  %2450 = vmatprep.subr.bf16.mxu0 0
  %2451 = vmatpush1.bf16.msra.mxu0 %v2243
  %2452 = vmatprep.subr.bf16.mxu0 0
  %2453 = vmatpush1.bf16.msra.mxu0 %v2244
  %2454 = vmatprep.subr.bf16.mxu0 0
  %2455 = vmatpush1.bf16.msra.mxu0 %v2245
  %2456 = vmatprep.subr.bf16.mxu0 0
  %2457 = vmatpush1.bf16.msra.mxu0 %v2246
  %2458 = vmatprep.subr.bf16.mxu0 0
  %2459 = vmatpush1.bf16.msra.mxu0 %v2247
  %2460 = vmatprep.subr.bf16.mxu0 0
  %2461 = vmatpush1.bf16.msra.mxu0 %v2248
  %2462 = vmatprep.subr.bf16.mxu0 0
  %2463 = vmatpush1.bf16.msra.mxu0 %v2249
  %2464 = vmatprep.subr.bf16.mxu0 0
  %2465 = vmatpush1.bf16.msra.mxu0 %v2250
  %2466 = vmatprep.subr.bf16.mxu0 0
  %2467 = vmatpush1.bf16.msra.mxu0 %v2251
  %2468 = vmatprep.subr.bf16.mxu0 0
  %2469 = vmatpush1.bf16.msra.mxu0 %v2252
  %2470 = vmatprep.subr.bf16.mxu0 0
  %2471 = vmatpush1.bf16.msra.mxu0 %v2253
  %2472 = vmatprep.subr.bf16.mxu0 0
  %2473 = vmatpush1.bf16.msra.mxu0 %v2254
  %2474 = vmatprep.mubr.bf16.mxu0 %v1620
  %2475 = vmatmul.mubr.bf16.gmra.mrb[0].mxu0 %v1619
  %v2476 = vpop.f32.mrb[0].mxu0
  %v2477 = vadd.f32 %v1837, %v2476
  %v2478 = vpop.f32.mrb[0].mxu0
  %v2479 = vpop.f32.mrb[0].mxu0
  %v2480 = vadd.f32 %v1837, %v2479
  %v2481 = vpop.f32.mrb[0].mxu0
  %2482 = vdwg.mxu0
  %2483 = vmatprep.subr.bf16.mxu0 0
  %2484 = vmatpush1.bf16.msra.mxu0 %v2255
  %2485 = vmatprep.subr.bf16.mxu0 0
  %2486 = vmatpush1.bf16.msra.mxu0 %v2256
  %2487 = vmatprep.subr.bf16.mxu0 0
  %2488 = vmatpush1.bf16.msra.mxu0 %v2257
  %2489 = vmatprep.subr.bf16.mxu0 0
  %2490 = vmatpush1.bf16.msra.mxu0 %v2258
  %2491 = vmatprep.subr.bf16.mxu0 0
  %2492 = vmatpush1.bf16.msra.mxu0 %v2259
  %2493 = vmatprep.subr.bf16.mxu0 0
  %2494 = vmatpush1.bf16.msra.mxu0 %v2260
  %2495 = vmatprep.subr.bf16.mxu0 0
  %2496 = vmatpush1.bf16.msra.mxu0 %v2261
  %2497 = vmatprep.subr.bf16.mxu0 0
  %2498 = vmatpush1.bf16.msra.mxu0 %v2262
  %2499 = vmatprep.subr.bf16.mxu0 0
  %2500 = vmatpush1.bf16.msra.mxu0 %v2263
  %2501 = vmatprep.subr.bf16.mxu0 0
  %2502 = vmatpush1.bf16.msra.mxu0 %v2264
  %2503 = vmatprep.subr.bf16.mxu0 0
  %2504 = vmatpush1.bf16.msra.mxu0 %v2265
  %2505 = vmatprep.subr.bf16.mxu0 0
  %2506 = vmatpush1.bf16.msra.mxu0 %v2266
  %2507 = vmatprep.subr.bf16.mxu0 0
  %2508 = vmatpush1.bf16.msra.mxu0 %v2267
  %2509 = vmatprep.subr.bf16.mxu0 0
  %2510 = vmatpush1.bf16.msra.mxu0 %v2268
  %2511 = vmatprep.subr.bf16.mxu0 0
  %2512 = vmatpush1.bf16.msra.mxu0 %v2269
  %2513 = vmatprep.subr.bf16.mxu0 0
  %2514 = vmatpush1.bf16.msra.mxu0 %v2270
  %2515 = vmatprep.mubr.bf16.mxu0 %v1622
  %2516 = vmatmul.mubr.bf16.gmra.mrb[0].mxu0 %v1621
  %v2517 = vpop.f32.mrb[0].mxu0
  %v2518 = vadd.f32 %v2477, %v2517
  %v2519 = vpop.f32.mrb[0].mxu0
  %v2520 = vpop.f32.mrb[0].mxu0
  %v2521 = vadd.f32 %v2480, %v2520
  %v2522 = vpop.f32.mrb[0].mxu0
  %2523 = vdwg.mxu0
  %2524 = vmatprep.subr.bf16.mxu0 0
  %2525 = vmatpush1.bf16.msra.mxu0 %v2271
  %2526 = vmatprep.subr.bf16.mxu0 0
  %2527 = vmatpush1.bf16.msra.mxu0 %v2272
  %2528 = vmatprep.subr.bf16.mxu0 0
  %2529 = vmatpush1.bf16.msra.mxu0 %v2273
  %2530 = vmatprep.subr.bf16.mxu0 0
  %2531 = vmatpush1.bf16.msra.mxu0 %v2274
  %2532 = vmatprep.subr.bf16.mxu0 0
  %2533 = vmatpush1.bf16.msra.mxu0 %v2275
  %2534 = vmatprep.subr.bf16.mxu0 0
  %2535 = vmatpush1.bf16.msra.mxu0 %v2276
  %2536 = vmatprep.subr.bf16.mxu0 0
  %2537 = vmatpush1.bf16.msra.mxu0 %v2277
  %2538 = vmatprep.subr.bf16.mxu0 0
  %2539 = vmatpush1.bf16.msra.mxu0 %v2278
  %2540 = vmatprep.subr.bf16.mxu0 0
  %2541 = vmatpush1.bf16.msra.mxu0 %v2279
  %2542 = vmatprep.subr.bf16.mxu0 0
  %2543 = vmatpush1.bf16.msra.mxu0 %v2280
  %2544 = vmatprep.subr.bf16.mxu0 0
  %2545 = vmatpush1.bf16.msra.mxu0 %v2281
  %2546 = vmatprep.subr.bf16.mxu0 0
  %2547 = vmatpush1.bf16.msra.mxu0 %v2282
  %2548 = vmatprep.subr.bf16.mxu0 0
  %2549 = vmatpush1.bf16.msra.mxu0 %v2283
  %2550 = vmatprep.subr.bf16.mxu0 0
  %2551 = vmatpush1.bf16.msra.mxu0 %v2284
  %2552 = vmatprep.subr.bf16.mxu0 0
  %2553 = vmatpush1.bf16.msra.mxu0 %v2285
  %2554 = vmatprep.subr.bf16.mxu0 0
  %2555 = vmatpush1.bf16.msra.mxu0 %v2286
  %2556 = vmatprep.mubr.bf16.mxu0 %v1624
  %2557 = vmatmul.mubr.bf16.gmra.mrb[0].mxu0 %v1623
  %v2558 = vpop.f32.mrb[0].mxu0
  %v2559 = vadd.f32 %v2518, %v2558
  %v2560 = vpop.f32.mrb[0].mxu0
  %v2561 = vpop.f32.mrb[0].mxu0
  %v2562 = vadd.f32 %v2521, %v2561
  %v2563 = vpop.f32.mrb[0].mxu0
  %2564 = vdwg.mxu0
  %2565 = vmatprep.subr.bf16.mxu0 0
  %2566 = vmatpush1.bf16.msra.mxu0 %v2287
  %2567 = vmatprep.subr.bf16.mxu0 0
  %2568 = vmatpush1.bf16.msra.mxu0 %v2288
  %2569 = vmatprep.subr.bf16.mxu0 0
  %2570 = vmatpush1.bf16.msra.mxu0 %v2289
  %2571 = vmatprep.subr.bf16.mxu0 0
  %2572 = vmatpush1.bf16.msra.mxu0 %v2290
  %2573 = vmatprep.subr.bf16.mxu0 0
  %2574 = vmatpush1.bf16.msra.mxu0 %v2291
  %2575 = vmatprep.subr.bf16.mxu0 0
  %2576 = vmatpush1.bf16.msra.mxu0 %v2292
  %2577 = vmatprep.subr.bf16.mxu0 0
  %2578 = vmatpush1.bf16.msra.mxu0 %v2293
  %2579 = vmatprep.subr.bf16.mxu0 0
  %2580 = vmatpush1.bf16.msra.mxu0 %v2294
  %2581 = vmatprep.subr.bf16.mxu0 0
  %2582 = vmatpush1.bf16.msra.mxu0 %v2295
  %2583 = vmatprep.subr.bf16.mxu0 0
  %2584 = vmatpush1.bf16.msra.mxu0 %v2296
  %2585 = vmatprep.subr.bf16.mxu0 0
  %2586 = vmatpush1.bf16.msra.mxu0 %v2297
  %2587 = vmatprep.subr.bf16.mxu0 0
  %2588 = vmatpush1.bf16.msra.mxu0 %v2298
  %2589 = vmatprep.subr.bf16.mxu0 0
  %2590 = vmatpush1.bf16.msra.mxu0 %v2299
  %2591 = vmatprep.subr.bf16.mxu0 0
  %2592 = vmatpush1.bf16.msra.mxu0 %v2300
  %2593 = vmatprep.subr.bf16.mxu0 0
  %2594 = vmatpush1.bf16.msra.mxu0 %v2301
  %2595 = vmatprep.subr.bf16.mxu0 0
  %2596 = vmatpush1.bf16.msra.mxu0 %v2302
  %2597 = vmatprep.mubr.bf16.mxu0 %v1626
  %2598 = vmatmul.mubr.bf16.gmra.mrb[0].mxu0 %v1625
  %v2599 = vpop.f32.mrb[0].mxu0
  %v2600 = vadd.f32 %v2559, %v2599
  %v2601 = vpop.f32.mrb[0].mxu0
  %v2602 = vpop.f32.mrb[0].mxu0
  %v2603 = vadd.f32 %v2562, %v2602
  %v2604 = vpop.f32.mrb[0].mxu0
  %2605 = vdwg.mxu0
  %2606 = vmatprep.subr.bf16.mxu0 0
  %2607 = vmatpush1.bf16.msra.mxu0 %v2303
  %2608 = vmatprep.subr.bf16.mxu0 0
  %2609 = vmatpush1.bf16.msra.mxu0 %v2304
  %2610 = vmatprep.subr.bf16.mxu0 0
  %2611 = vmatpush1.bf16.msra.mxu0 %v2305
  %2612 = vmatprep.subr.bf16.mxu0 0
  %2613 = vmatpush1.bf16.msra.mxu0 %v2306
  %2614 = vmatprep.subr.bf16.mxu0 0
  %2615 = vmatpush1.bf16.msra.mxu0 %v2307
  %2616 = vmatprep.subr.bf16.mxu0 0
  %2617 = vmatpush1.bf16.msra.mxu0 %v2308
  %2618 = vmatprep.subr.bf16.mxu0 0
  %2619 = vmatpush1.bf16.msra.mxu0 %v2309
  %2620 = vmatprep.subr.bf16.mxu0 0
  %2621 = vmatpush1.bf16.msra.mxu0 %v2310
  %2622 = vmatprep.subr.bf16.mxu0 0
  %2623 = vmatpush1.bf16.msra.mxu0 %v2311
  %2624 = vmatprep.subr.bf16.mxu0 0
  %2625 = vmatpush1.bf16.msra.mxu0 %v2312
  %2626 = vmatprep.subr.bf16.mxu0 0
  %2627 = vmatpush1.bf16.msra.mxu0 %v2313
  %2628 = vmatprep.subr.bf16.mxu0 0
  %2629 = vmatpush1.bf16.msra.mxu0 %v2314
  %2630 = vmatprep.subr.bf16.mxu0 0
  %2631 = vmatpush1.bf16.msra.mxu0 %v2315
  %2632 = vmatprep.subr.bf16.mxu0 0
  %2633 = vmatpush1.bf16.msra.mxu0 %v2316
  %2634 = vmatprep.subr.bf16.mxu0 0
  %2635 = vmatpush1.bf16.msra.mxu0 %v2317
  %2636 = vmatprep.subr.bf16.mxu0 0
  %2637 = vmatpush1.bf16.msra.mxu0 %v2318
  %2638 = vmatprep.mubr.bf16.mxu0 %v1628
  %2639 = vmatmul.mubr.bf16.gmra.mrb[0].mxu0 %v1627
  %v2640 = vpop.f32.mrb[0].mxu0
  %v2641 = vadd.f32 %v2600, %v2640
  %v2642 = vpop.f32.mrb[0].mxu0
  %v2643 = vpop.f32.mrb[0].mxu0
  %v2644 = vadd.f32 %v2603, %v2643
  %v2645 = vpop.f32.mrb[0].mxu0
  %2646 = vdwg.mxu0
  %2647 = vmatprep.subr.bf16.mxu0 0
  %2648 = vmatpush1.bf16.msra.mxu0 %v2319
  %2649 = vmatprep.subr.bf16.mxu0 0
  %2650 = vmatpush1.bf16.msra.mxu0 %v2320
  %2651 = vmatprep.subr.bf16.mxu0 0
  %2652 = vmatpush1.bf16.msra.mxu0 %v2321
  %2653 = vmatprep.subr.bf16.mxu0 0
  %2654 = vmatpush1.bf16.msra.mxu0 %v2322
  %2655 = vmatprep.subr.bf16.mxu0 0
  %2656 = vmatpush1.bf16.msra.mxu0 %v2323
  %2657 = vmatprep.subr.bf16.mxu0 0
  %2658 = vmatpush1.bf16.msra.mxu0 %v2324
  %2659 = vmatprep.subr.bf16.mxu0 0
  %2660 = vmatpush1.bf16.msra.mxu0 %v2325
  %2661 = vmatprep.subr.bf16.mxu0 0
  %2662 = vmatpush1.bf16.msra.mxu0 %v2326
  %2663 = vmatprep.subr.bf16.mxu0 0
  %2664 = vmatpush1.bf16.msra.mxu0 %v2327
  %2665 = vmatprep.subr.bf16.mxu0 0
  %2666 = vmatpush1.bf16.msra.mxu0 %v2328
  %2667 = vmatprep.subr.bf16.mxu0 0
  %2668 = vmatpush1.bf16.msra.mxu0 %v2329
  %2669 = vmatprep.subr.bf16.mxu0 0
  %2670 = vmatpush1.bf16.msra.mxu0 %v2330
  %2671 = vmatprep.subr.bf16.mxu0 0
  %2672 = vmatpush1.bf16.msra.mxu0 %v2331
  %2673 = vmatprep.subr.bf16.mxu0 0
  %2674 = vmatpush1.bf16.msra.mxu0 %v2332
  %2675 = vmatprep.subr.bf16.mxu0 0
  %2676 = vmatpush1.bf16.msra.mxu0 %v2333
  %2677 = vmatprep.subr.bf16.mxu0 0
  %2678 = vmatpush1.bf16.msra.mxu0 %v2334
  %2679 = vmatprep.mubr.bf16.mxu0 %v1630
  %2680 = vmatmul.mubr.bf16.gmra.mrb[0].mxu0 %v1629
  %v2681 = vpop.f32.mrb[0].mxu0
  %v2682 = vadd.f32 %v2641, %v2681
  %v2683 = vpop.f32.mrb[0].mxu0
  %v2684 = vpop.f32.mrb[0].mxu0
  %v2685 = vadd.f32 %v2644, %v2684
  %v2686 = vpop.f32.mrb[0].mxu0
  %2687 = vdwg.mxu0
  %2688 = vmatprep.subr.bf16.mxu0 0
  %2689 = vmatpush1.bf16.msra.mxu0 %v2335
  %2690 = vmatprep.subr.bf16.mxu0 0
  %2691 = vmatpush1.bf16.msra.mxu0 %v2336
  %2692 = vmatprep.subr.bf16.mxu0 0
  %2693 = vmatpush1.bf16.msra.mxu0 %v2337
  %2694 = vmatprep.subr.bf16.mxu0 0
  %2695 = vmatpush1.bf16.msra.mxu0 %v2338
  %2696 = vmatprep.subr.bf16.mxu0 0
  %2697 = vmatpush1.bf16.msra.mxu0 0
  %2698 = vmatprep.subr.bf16.mxu0 0
  %2699 = vmatpush1.bf16.msra.mxu0 0
  %2700 = vmatprep.subr.bf16.mxu0 0
  %2701 = vmatpush1.bf16.msra.mxu0 0
  %2702 = vmatprep.subr.bf16.mxu0 0
  %2703 = vmatpush1.bf16.msra.mxu0 0
  %2704 = vmatprep.subr.bf16.mxu0 0
  %2705 = vmatpush1.bf16.msra.mxu0 0
  %2706 = vmatprep.subr.bf16.mxu0 0
  %2707 = vmatpush1.bf16.msra.mxu0 0
  %2708 = vmatprep.subr.bf16.mxu0 0
  %2709 = vmatpush1.bf16.msra.mxu0 0
  %2710 = vmatprep.subr.bf16.mxu0 0
  %2711 = vmatpush1.bf16.msra.mxu0 0
  %2712 = vmatprep.subr.bf16.mxu0 0
  %2713 = vmatpush1.bf16.msra.mxu0 0
  %2714 = vmatprep.subr.bf16.mxu0 0
  %2715 = vmatpush1.bf16.msra.mxu0 0
  %2716 = vmatprep.subr.bf16.mxu0 0
  %2717 = vmatpush1.bf16.msra.mxu0 0
  %2718 = vmatprep.subr.bf16.mxu0 0
  %2719 = vmatpush1.bf16.msra.mxu0 0
  %2720 = vmatprep.mubr.bf16.mxu0 0
  %2721 = vmatmul.mubr.bf16.gmra.mrb[0].mxu0 %v2440
  %v2722 = vpop.f32.mrb[0].mxu0
  %v2723 = vadd.f32 %v2682, %v2722
  %v2724 = vpop.f32.mrb[0].mxu0
  %v2725 = vpop.f32.mrb[0].mxu0
  %v2726 = vadd.f32 %v2685, %v2725
  %v2727 = vpop.f32.mrb[0].mxu0
  %2728 = vdwg.mxu0
  %v2730 = vrot.slane %v2726, 7
  %vm2732 = vcmask 1040384
  %v2733 = vsel %vm2732, %v2723, %v2730
  %v2734 = vtanh.pop %v2733
  %v2735 = vpack.c.bf16 %v2734, %v2734
  %v2736 = vld [vmem:[%s10] sm:$0xf]
  %v2737 = vld [vmem:[%s10 + $0x4] sm:$0xf]
  %v2738 = vld [vmem:[%s10 + $0x8] sm:$0xf]
  %v2739 = vld [vmem:[%s10 + $0xc] sm:$0xf]
  %v2740 = vld [vmem:[%s10 + $0x10] sm:$0xf]
  %v2741 = vld [vmem:[%s10 + $0x14] sm:$0xf]
  %v2742 = vld [vmem:[%s10 + $0x18] sm:$0xf]
  %v2743 = vld [vmem:[%s10 + $0x1c] sm:$0xf]
  %v2744 = vld [vmem:[%s10 + $0x20] sm:$0xf]
  %v2745 = vld [vmem:[%s10 + $0x24] sm:$0xf]
  %v2746 = vld [vmem:[%s10 + $0x28] sm:$0xf]
  %v2747 = vld [vmem:[%s10 + $0x2c] sm:$0xf]
  %v2748 = vld [vmem:[%s10 + $0x30] sm:$0xf]
  %v2749 = vld [vmem:[%s10 + $0x34] sm:$0xf]
  %v2750 = vld [vmem:[%s10 + $0x38] sm:$0xf]
  %v2751 = vld [vmem:[%s10 + $0x3c] sm:$0xf]
  %v2752 = vld [vmem:[%s11] sm:$0x1]
  %v2754 = vlaneseq
  %v2755 = vshrl.u32 %v2754, 7
  %v2756 = vsub.s32 0, %v2755
  %v2757 = vrot.slane %v2752, %v2756
  %v2775 = vunpack.c.l.b16 %v2736
  %v2776 = vunpack.c.l.b16 %v2737
  %v2777 = vunpack.c.l.b16 %v2738
  %v2778 = vunpack.c.l.b16 %v2739
  %v2779 = vunpack.c.l.b16 %v2740
  %v2780 = vunpack.c.l.b16 %v2741
  %v2781 = vunpack.c.l.b16 %v2742
  %v2782 = vunpack.c.l.b16 %v2743
  %v2783 = vunpack.c.l.b16 %v2744
  %v2784 = vunpack.c.l.b16 %v2745
  %v2785 = vunpack.c.l.b16 %v2746
  %v2786 = vunpack.c.l.b16 %v2747
  %v2787 = vunpack.c.l.b16 %v2748
  %v2788 = vunpack.c.l.b16 %v2749
  %v2789 = vunpack.c.l.b16 %v2750
  %v2790 = vunpack.c.l.b16 %v2751
  %v2791 = vpack.c.b16 %v2776, %v2775
  %v2792 = vpack.c.b16 %v2778, %v2777
  %v2793 = vpack.c.b16 %v2780, %v2779
  %v2794 = vpack.c.b16 %v2782, %v2781
  %v2795 = vpack.c.b16 %v2784, %v2783
  %v2796 = vpack.c.b16 %v2786, %v2785
  %v2797 = vpack.c.b16 %v2788, %v2787
  %v2798 = vpack.c.b16 %v2790, %v2789
  %2807 = vmatprep.subr.bf16.mxu0 0
  %2808 = vmatpush1.bf16.msra.mxu0 %v2791
  %2809 = vmatprep.subr.bf16.mxu0 0
  %2810 = vmatpush1.bf16.msra.mxu0 %v2792
  %2811 = vmatprep.subr.bf16.mxu0 0
  %2812 = vmatpush1.bf16.msra.mxu0 %v2793
  %2813 = vmatprep.subr.bf16.mxu0 0
  %2814 = vmatpush1.bf16.msra.mxu0 %v2794
  %2815 = vmatprep.subr.bf16.mxu0 0
  %2816 = vmatpush1.bf16.msra.mxu0 %v2795
  %2817 = vmatprep.subr.bf16.mxu0 0
  %2818 = vmatpush1.bf16.msra.mxu0 %v2796
  %2819 = vmatprep.subr.bf16.mxu0 0
  %2820 = vmatpush1.bf16.msra.mxu0 %v2797
  %2821 = vmatprep.subr.bf16.mxu0 0
  %2822 = vmatpush1.bf16.msra.mxu0 %v2798
  %2823 = vmatprep.subr.bf16.mxu0 0
  %2824 = vmatpush1.bf16.msra.mxu0 0
  %2825 = vmatprep.subr.bf16.mxu0 0
  %2826 = vmatpush1.bf16.msra.mxu0 0
  %2827 = vmatprep.subr.bf16.mxu0 0
  %2828 = vmatpush1.bf16.msra.mxu0 0
  %2829 = vmatprep.subr.bf16.mxu0 0
  %2830 = vmatpush1.bf16.msra.mxu0 0
  %2831 = vmatprep.subr.bf16.mxu0 0
  %2832 = vmatpush1.bf16.msra.mxu0 0
  %2833 = vmatprep.subr.bf16.mxu0 0
  %2834 = vmatpush1.bf16.msra.mxu0 0
  %2835 = vmatprep.subr.bf16.mxu0 0
  %2836 = vmatpush1.bf16.msra.mxu0 0
  %2837 = vmatprep.subr.bf16.mxu0 0
  %2838 = vmatpush1.bf16.msra.mxu0 0
  %2839 = vmatprep.mubr.bf16.mxu0 0
  %2840 = vmatmul.mubr.bf16.gmra.mrb[0].mxu0 %v2735
  %v2841 = vpop.f32.mrb[0].mxu0
  %v2842 = vadd.f32 %v2757, %v2841
  %v2843 = vpop.f32.mrb[0].mxu0
  %v2844 = vpop.f32.mrb[0].mxu0
  %v2845 = vpop.f32.mrb[0].mxu0
  %2846 = vdwg.mxu0
  %v2847 = vlaneseq
  %v2848 = vand.u32 %v2847, 127
  %vm2849 = vcmp.lt.s32.totalorder %v2848, 7
  %v2850 = vsel %vm2849, %v2842, -1e+30
  %vm2851 = vcmask 1041408
  %v2852 = vsel %vm2851, %v2850, -inf
  %2853 = vmax.xlane.f32.xlu0 %v2852
  %v2854 = vpop.xlane.xlu0 %2853
  %v2855 = vsub.f32 %v2850, %v2854
  %v2856 = vmul.f32 %v2855, 1.442695
  %v2857 = vpow.pop %v2856
  %v2858 = vsel %vm2851, %v2857, 0.0
  %2859 = vadd.xlane.f32.xlu0 %v2858
  %v2860 = vpop.xlane.xlu0 %2859
  %v2861 = vlog2.pop %v2860
  %v2862 = vmul.f32 %v2861, 0.6931472
  %v2863 = vsub.f32 %v2855, %v2862
  %v2864 = vsel %vm2849, %v2863, %v2842
  %2865 = vst [vmem:[%s12] sm:$0x3] %v2864
  // Predicated region
  $region50: #{forward.1} parent=0 // pred_check
    _
  $region51: #{forward.1} parent=0 // pred_check_branch
    %2867 = sbr.rel (0) target = $region53
  $region52: #{forward.1} parent=0 // pred_region
    _
  $region53: #{forward.1} parent=0 // pred_fallthru
    _
  // Predicated region
  $region54: #{forward.1} parent=0 // pred_check
    _
  $region55: #{forward.1} parent=0 // pred_check_branch
    %2869 = sbr.rel (0) target = $region57
  $region56: #{forward.1} parent=0 // pred_region
    _
  $region57: #{forward.1} parent=0 // pred_fallthru
    _

</llo_original>
